<compile_context>
chip_gen: v6e
topology: v6e:2x2x1
jax: 0.10.0
libtpu: 0.0.40
codegen_flags: <defaults>
</compile_context>

<pallas_src>
import functools

import jax
import jax.numpy as jnp
from jax import lax
from jax.experimental import pallas as pl
from jax.experimental.pallas import tpu as pltpu

LEAKY_SLOPE = 0.01   # nn.LeakyReLU default negative_slope
BN_EPS = 1e-5        # nn.BatchNorm1d default eps


# --------------------------------- kernel ------------------------------------

def _fused_kernel(x_ref, w_ref, a_ref, o_ref, *, upsample, seg_len):
    """x_ref: (C_pad, B*T) activations, time on lanes (samples concatenated).
    w_ref: (12, C_pad, C_pad) conv taps, order [dec.w1, dec.w2, gen.w1, gen.w2] x [t-1,t,t+1].
    a_ref: (6, C_pad, 1) per-channel vectors [dec.scale, dec.shift, dec.b2,
                                              gen.scale, gen.shift, gen.b2].
    o_ref: (U, C_pad, B*T) output phases; phase u holds upsampled samples t*U+u.
    """
    u_fac = upsample
    x = x_ref[...]                                    # (cp, W) f32
    width = x.shape[-1]

    # Per-sample boundary masks, built once and shared by every conv (both
    # resolutions only ever mask at low-res sample edges in polyphase form).
    # Small static loop of lane compares instead of a vector integer mod.
    cols = lax.broadcasted_iota(jnp.int32, (1, width), 1)
    first = cols == 0
    last = cols == seg_len - 1
    for b in range(1, width // seg_len):
        first = jnp.logical_or(first, cols == b * seg_len)
        last = jnp.logical_or(last, cols == b * seg_len + seg_len - 1)
    not_first = 1.0 - first.astype(jnp.float32)
    not_last = 1.0 - last.astype(jnp.float32)

    def prev(z):                                      # z[:, l-1], zero at sample starts
        return pltpu.roll(z, shift=1, axis=1) * not_first

    def nxt(z):                                       # z[:, l+1], zero at sample ends
        return pltpu.roll(z, shift=width - 1, axis=1) * not_last

    def conv3(zl, zc, zr, cidx):                      # k=3 'same' Conv1d, no bias
        base = 3 * cidx
        acc = jnp.dot(w_ref[base + 1], zc, preferred_element_type=jnp.float32)
        acc = acc + jnp.dot(w_ref[base], zl, preferred_element_type=jnp.float32)
        acc = acc + jnp.dot(w_ref[base + 2], zr, preferred_element_type=jnp.float32)
        return acc

    def affine_lrelu(h, aidx):                        # folded (conv1 bias + BN) affine
        h = h * a_ref[aidx] + a_ref[aidx + 1]
        return jnp.where(h > 0, h, LEAKY_SLOPE * h)

    # ---------------- y = dec_block(x) at low resolution ---------------------
    h = affine_lrelu(conv3(prev(x), x, nxt(x), 0), 0)
    y = conv3(prev(h), h, nxt(h), 1) + a_ref[2]

    # ----------- gen_block(nearest_upsample(y)) in polyphase form ------------
    # y_up[:, t*U+u] == y[:, t] for every phase u; a conv-3 neighbour of phase u
    # lives in phase (u-1)/(u+1) at the same t, except at phase 0 / U-1 where it
    # crosses a low-res sample boundary (handled by the same prev/nxt masks).
    def phase_neighbours(slabs, u):
        zl = slabs[(u - 1) % u_fac]
        if u == 0:
            zl = prev(zl)
        zr = slabs[(u + 1) % u_fac]
        if u == u_fac - 1:
            zr = nxt(zr)
        return zl, zr

    ys = [y] * u_fac
    acts = []
    for u in range(u_fac):
        zl, zr = phase_neighbours(ys, u)
        acts.append(affine_lrelu(conv3(zl, ys[u], zr, 2), 3))

    base = x + y                                      # x_up + y_up (identical per phase)
    for u in range(u_fac):
        zl, zr = phase_neighbours(acts, u)
        g = conv3(zl, acts[u], zr, 3) + a_ref[5]
        o_ref[u] = (base + g).astype(o_ref.dtype)


# ------------------------------ wrapper glue ----------------------------------

def _pack_params(params, cp):
    """Fold conv1-bias+BN and pack torch-layout params into two padded slabs."""
    taps, affs = [], []
    for name in ("dec", "gen"):
        p = params[name]
        bn = p["bn"]
        scale = bn["gamma"] * lax.rsqrt(bn["var"] + BN_EPS)
        shift = bn["beta"] - bn["mean"] * scale + scale * p["b1"]   # conv1 bias folded
        for w in (p["w1"], p["w2"]):                  # torch (c_out, c_in, 3)
            co, ci, _ = w.shape
            wt = jnp.transpose(w, (2, 0, 1))          # (3, c_out, c_in), taps [t-1,t,t+1]
            taps.append(jnp.pad(wt, ((0, 0), (0, cp - co), (0, cp - ci))))
        for v in (scale, shift, p["b2"]):
            affs.append(jnp.pad(v, (0, cp - v.shape[0])))
    w_slab = jnp.concatenate(taps, axis=0)            # (12, cp, cp)
    a_slab = jnp.stack(affs)[:, :, None]              # (6, cp, 1)
    return w_slab, a_slab


def dec_conv_block_forward(x_bct, params, upsample):
    """x_bct: (B, c_in, T) in the native PyTorch Conv1d layout."""
    b_sz, c_in, t_len = x_bct.shape
    c_h = params["dec"]["w1"].shape[0]
    cp = ((max(c_in, c_h) + 7) // 8) * 8              # one f32 sublane tile of channels
    width = b_sz * t_len                              # B folded into the lane axis

    x = jnp.transpose(x_bct.astype(jnp.float32), (1, 0, 2)).reshape(c_in, width)
    x = jnp.pad(x, ((0, cp - c_in), (0, 0)))
    w_slab, a_slab = _pack_params(params, cp)

    kernel = functools.partial(_fused_kernel, upsample=upsample, seg_len=t_len)
    vmem = pl.BlockSpec(memory_space=pltpu.MemorySpace.VMEM)
    out = pl.pallas_call(
        kernel,
        out_shape=jax.ShapeDtypeStruct((upsample, cp, width), jnp.float32),
        in_specs=[vmem, vmem, vmem],
        out_specs=vmem,
    )(x, w_slab, a_slab)

    # Interleave the U phases back to true time order (exact, tiny XLA reshape).
    out = out[:, :c_in, :].reshape(upsample, c_in, b_sz, t_len)
    return jnp.transpose(out, (2, 1, 3, 0)).reshape(b_sz, c_in, t_len * upsample)


# --------------------------- deterministic params -----------------------------

def init_params(key, c_in, c_h):
    """PyTorch-layout parameters (conv weights (co, ci, 3), BN running stats)."""
    ks = jax.random.split(key, 10)

    def conv(kw, kb, co, ci):
        w = 0.2 * jax.random.normal(kw, (co, ci, 3), jnp.float32)
        b = 0.1 * jax.random.normal(kb, (co,), jnp.float32)
        return w, b

    def bn(k):
        k1, k2, k3, k4 = jax.random.split(k, 4)
        return {"gamma": 1.0 + 0.1 * jax.random.normal(k1, (c_h,), jnp.float32),
                "beta": 0.1 * jax.random.normal(k2, (c_h,), jnp.float32),
                "mean": 0.1 * jax.random.normal(k3, (c_h,), jnp.float32),
                "var": 0.5 + jnp.abs(jax.random.normal(k4, (c_h,), jnp.float32))}

    def block(k0, k1, k2, k3, k4):
        w1, b1 = conv(k0, k1, c_h, c_in)              # ConvNorm c_in -> c_h
        w2, b2 = conv(k3, k4, c_in, c_h)              # ConvNorm c_h -> c_in
        return {"w1": w1, "b1": b1, "bn": bn(k2), "w2": w2, "b2": b2}

    return {"dec": block(*ks[0:5]), "gen": block(*ks[5:10])}


# ----------------------------- pure-JAX reference ------------------------------

def _conv3_ref(x, w, b):
    out = lax.conv_general_dilated(x, w, (1,), [(1, 1)],
                                   dimension_numbers=("NCH", "OIH", "NCH"))
    return out + b[None, :, None]


def _block_ref(x, p):
    bn = p["bn"]
    h = _conv3_ref(x, p["w1"], p["b1"])
    h = ((h - bn["mean"][None, :, None]) / jnp.sqrt(bn["var"] + BN_EPS)[None, :, None]
         * bn["gamma"][None, :, None] + bn["beta"][None, :, None])
    h = jnp.where(h > 0, h, LEAKY_SLOPE * h)
    return _conv3_ref(h, p["w2"], p["b2"])


def forward_ref(x, params, upsample):
    y = _block_ref(x, params["dec"])
    if upsample > 1:
        x = jnp.repeat(x, upsample, axis=2)           # F.interpolate mode='nearest'
        y = jnp.repeat(y, upsample, axis=2)
    y = y + _block_ref(y, params["gen"])
    return x + y


# ----------------------------------- main --------------------------------------

if __name__ == "__main__":
    B, C_IN, C_H, T, UPSAMPLE = 2, 4, 8, 16, 2

    key = jax.random.PRNGKey(0)
    kx, kp = jax.random.split(key)
    x = jax.random.normal(kx, (B, C_IN, T), jnp.float32)     # PyTorch (B, C, T)
    params = init_params(kp, C_IN, C_H)

    out = jax.block_until_ready(dec_conv_block_forward(x, params, UPSAMPLE))

    ref = forward_ref(x, params, UPSAMPLE)
    assert out.shape == (B, C_IN, T * UPSAMPLE), out.shape
    err = float(jnp.max(jnp.abs(out - ref)))
    # Tolerance covers TPU default matmul precision differences between the
    # in-kernel dots and the XLA reference convolutions (upsample itself is exact now).
    assert err < 3e-2, f"max abs err {err}"

    print("KERNEL_OK")
</pallas_src>

<mosaic_0001>
module attributes {stable_mosaic.version = 11 : i64} {
  func.func @_fused_kernel(%arg0: memref<8x32xf32, #tpu.memory_space<vmem>>, %arg1: memref<12x8x8xf32, #tpu.memory_space<vmem>>, %arg2: memref<6x8x1xf32, #tpu.memory_space<vmem>>, %arg3: memref<2x8x32xf32, #tpu.memory_space<vmem>>) attributes {dimension_semantics = [], scalar_prefetch = 0 : i64, scratch_operands = 0 : i64, tpu.core_type = #tpu.core_type<tc>} {
    %c0 = arith.constant 0 : index
    %c0_0 = arith.constant 0 : index
    %0 = vector.load %arg0[%c0, %c0_0] : memref<8x32xf32, #tpu.memory_space<vmem>>, vector<8x32xf32>
    %1 = tpu.iota {dimensions = array<i32: 1>} : vector<1x32xi32>
    %c0_i32 = arith.constant 0 : i32
    %2 = vector.broadcast %c0_i32 : i32 to vector<1x32xi32>
    %3 = arith.cmpi eq, %1, %2 : vector<1x32xi32>
    %c15_i32 = arith.constant 15 : i32
    %4 = vector.broadcast %c15_i32 : i32 to vector<1x32xi32>
    %5 = arith.cmpi eq, %1, %4 : vector<1x32xi32>
    %c16_i32 = arith.constant 16 : i32
    %6 = vector.broadcast %c16_i32 : i32 to vector<1x32xi32>
    %7 = arith.cmpi eq, %1, %6 : vector<1x32xi32>
    %8 = arith.ori %3, %7 : vector<1x32xi1>
    %c31_i32 = arith.constant 31 : i32
    %9 = vector.broadcast %c31_i32 : i32 to vector<1x32xi32>
    %10 = arith.cmpi eq, %1, %9 : vector<1x32xi32>
    %11 = arith.ori %5, %10 : vector<1x32xi1>
    %12 = arith.extui %8 : vector<1x32xi1> to vector<1x32xi32>
    %13 = arith.sitofp %12 : vector<1x32xi32> to vector<1x32xf32>
    %cst = arith.constant 1.000000e+00 : f32
    %14 = vector.broadcast %cst : f32 to vector<1x32xf32>
    %15 = arith.subf %14, %13 : vector<1x32xf32>
    %16 = arith.extui %11 : vector<1x32xi1> to vector<1x32xi32>
    %17 = arith.sitofp %16 : vector<1x32xi32> to vector<1x32xf32>
    %cst_1 = arith.constant 1.000000e+00 : f32
    %18 = vector.broadcast %cst_1 : f32 to vector<1x32xf32>
    %19 = arith.subf %18, %17 : vector<1x32xf32>
    %c1_i32 = arith.constant 1 : i32
    %20 = tpu.dynamic_rotate %0 by %c1_i32 dim 1 : vector<8x32xf32>, i32 -> vector<8x32xf32>
    %21 = vector.broadcast %15 : vector<1x32xf32> to vector<8x32xf32>
    %22 = arith.mulf %20, %21 : vector<8x32xf32>
    %c31_i32_2 = arith.constant 31 : i32
    %23 = tpu.dynamic_rotate %0 by %c31_i32_2 dim 1 : vector<8x32xf32>, i32 -> vector<8x32xf32>
    %24 = vector.broadcast %19 : vector<1x32xf32> to vector<8x32xf32>
    %25 = arith.mulf %23, %24 : vector<8x32xf32>
    %c1 = arith.constant 1 : index
    %c0_3 = arith.constant 0 : index
    %c0_4 = arith.constant 0 : index
    %26 = vector.load %arg1[%c1, %c0_3, %c0_4] : memref<12x8x8xf32, #tpu.memory_space<vmem>>, vector<1x8x8xf32>
    %27 = vector.shape_cast %26 : vector<1x8x8xf32> to vector<8x8xf32>
    %cst_5 = arith.constant dense<0.000000e+00> : vector<8x32xf32>
    %28 = tpu.matmul %27, %0, %cst_5 {dimension_numbers = #tpu.dot_dimension_numbers<[1], [0], [0], [1], [0, 0, 1, 1], [], []>} : vector<8x8xf32>, vector<8x32xf32>, vector<8x32xf32> -> vector<8x32xf32>
    %c0_6 = arith.constant 0 : index
    %c0_7 = arith.constant 0 : index
    %c0_8 = arith.constant 0 : index
    %29 = vector.load %arg1[%c0_6, %c0_7, %c0_8] : memref<12x8x8xf32, #tpu.memory_space<vmem>>, vector<1x8x8xf32>
    %30 = vector.shape_cast %29 : vector<1x8x8xf32> to vector<8x8xf32>
    %cst_9 = arith.constant dense<0.000000e+00> : vector<8x32xf32>
    %31 = tpu.matmul %30, %22, %cst_9 {dimension_numbers = #tpu.dot_dimension_numbers<[1], [0], [0], [1], [0, 0, 1, 1], [], []>} : vector<8x8xf32>, vector<8x32xf32>, vector<8x32xf32> -> vector<8x32xf32>
    %32 = arith.addf %28, %31 : vector<8x32xf32>
    %c2 = arith.constant 2 : index
    %c0_10 = arith.constant 0 : index
    %c0_11 = arith.constant 0 : index
    %33 = vector.load %arg1[%c2, %c0_10, %c0_11] : memref<12x8x8xf32, #tpu.memory_space<vmem>>, vector<1x8x8xf32>
    %34 = vector.shape_cast %33 : vector<1x8x8xf32> to vector<8x8xf32>
    %cst_12 = arith.constant dense<0.000000e+00> : vector<8x32xf32>
    %35 = tpu.matmul %34, %25, %cst_12 {dimension_numbers = #tpu.dot_dimension_numbers<[1], [0], [0], [1], [0, 0, 1, 1], [], []>} : vector<8x8xf32>, vector<8x32xf32>, vector<8x32xf32> -> vector<8x32xf32>
    %36 = arith.addf %32, %35 : vector<8x32xf32>
    %c0_13 = arith.constant 0 : index
    %c0_14 = arith.constant 0 : index
    %c0_15 = arith.constant 0 : index
    %37 = vector.load %arg2[%c0_13, %c0_14, %c0_15] : memref<6x8x1xf32, #tpu.memory_space<vmem>>, vector<1x8x1xf32>
    %38 = vector.shape_cast %37 : vector<1x8x1xf32> to vector<8x1xf32>
    %39 = vector.broadcast %38 : vector<8x1xf32> to vector<8x32xf32>
    %40 = arith.mulf %36, %39 : vector<8x32xf32>
    %c1_16 = arith.constant 1 : index
    %c0_17 = arith.constant 0 : index
    %c0_18 = arith.constant 0 : index
    %41 = vector.load %arg2[%c1_16, %c0_17, %c0_18] : memref<6x8x1xf32, #tpu.memory_space<vmem>>, vector<1x8x1xf32>
    %42 = vector.shape_cast %41 : vector<1x8x1xf32> to vector<8x1xf32>
    %43 = vector.broadcast %42 : vector<8x1xf32> to vector<8x32xf32>
    %44 = arith.addf %40, %43 : vector<8x32xf32>
    %cst_19 = arith.constant 0.000000e+00 : f32
    %45 = vector.broadcast %cst_19 : f32 to vector<8x32xf32>
    %46 = arith.cmpf ogt, %44, %45 : vector<8x32xf32>
    %cst_20 = arith.constant 0.00999999977 : f32
    %47 = vector.broadcast %cst_20 : f32 to vector<8x32xf32>
    %48 = arith.mulf %47, %44 : vector<8x32xf32>
    %49 = arith.select %46, %44, %48 : vector<8x32xi1>, vector<8x32xf32>
    %c1_i32_21 = arith.constant 1 : i32
    %50 = tpu.dynamic_rotate %49 by %c1_i32_21 dim 1 : vector<8x32xf32>, i32 -> vector<8x32xf32>
    %51 = vector.broadcast %15 : vector<1x32xf32> to vector<8x32xf32>
    %52 = arith.mulf %50, %51 : vector<8x32xf32>
    %c31_i32_22 = arith.constant 31 : i32
    %53 = tpu.dynamic_rotate %49 by %c31_i32_22 dim 1 : vector<8x32xf32>, i32 -> vector<8x32xf32>
    %54 = vector.broadcast %19 : vector<1x32xf32> to vector<8x32xf32>
    %55 = arith.mulf %53, %54 : vector<8x32xf32>
    %c4 = arith.constant 4 : index
    %c0_23 = arith.constant 0 : index
    %c0_24 = arith.constant 0 : index
    %56 = vector.load %arg1[%c4, %c0_23, %c0_24] : memref<12x8x8xf32, #tpu.memory_space<vmem>>, vector<1x8x8xf32>
    %57 = vector.shape_cast %56 : vector<1x8x8xf32> to vector<8x8xf32>
    %cst_25 = arith.constant dense<0.000000e+00> : vector<8x32xf32>
    %58 = tpu.matmul %57, %49, %cst_25 {dimension_numbers = #tpu.dot_dimension_numbers<[1], [0], [0], [1], [0, 0, 1, 1], [], []>} : vector<8x8xf32>, vector<8x32xf32>, vector<8x32xf32> -> vector<8x32xf32>
    %c3 = arith.constant 3 : index
    %c0_26 = arith.constant 0 : index
    %c0_27 = arith.constant 0 : index
    %59 = vector.load %arg1[%c3, %c0_26, %c0_27] : memref<12x8x8xf32, #tpu.memory_space<vmem>>, vector<1x8x8xf32>
    %60 = vector.shape_cast %59 : vector<1x8x8xf32> to vector<8x8xf32>
    %cst_28 = arith.constant dense<0.000000e+00> : vector<8x32xf32>
    %61 = tpu.matmul %60, %52, %cst_28 {dimension_numbers = #tpu.dot_dimension_numbers<[1], [0], [0], [1], [0, 0, 1, 1], [], []>} : vector<8x8xf32>, vector<8x32xf32>, vector<8x32xf32> -> vector<8x32xf32>
    %62 = arith.addf %58, %61 : vector<8x32xf32>
    %c5 = arith.constant 5 : index
    %c0_29 = arith.constant 0 : index
    %c0_30 = arith.constant 0 : index
    %63 = vector.load %arg1[%c5, %c0_29, %c0_30] : memref<12x8x8xf32, #tpu.memory_space<vmem>>, vector<1x8x8xf32>
    %64 = vector.shape_cast %63 : vector<1x8x8xf32> to vector<8x8xf32>
    %cst_31 = arith.constant dense<0.000000e+00> : vector<8x32xf32>
    %65 = tpu.matmul %64, %55, %cst_31 {dimension_numbers = #tpu.dot_dimension_numbers<[1], [0], [0], [1], [0, 0, 1, 1], [], []>} : vector<8x8xf32>, vector<8x32xf32>, vector<8x32xf32> -> vector<8x32xf32>
    %66 = arith.addf %62, %65 : vector<8x32xf32>
    %c2_32 = arith.constant 2 : index
    %c0_33 = arith.constant 0 : index
    %c0_34 = arith.constant 0 : index
    %67 = vector.load %arg2[%c2_32, %c0_33, %c0_34] : memref<6x8x1xf32, #tpu.memory_space<vmem>>, vector<1x8x1xf32>
    %68 = vector.shape_cast %67 : vector<1x8x1xf32> to vector<8x1xf32>
    %69 = vector.broadcast %68 : vector<8x1xf32> to vector<8x32xf32>
    %70 = arith.addf %66, %69 : vector<8x32xf32>
    %c1_i32_35 = arith.constant 1 : i32
    %71 = tpu.dynamic_rotate %70 by %c1_i32_35 dim 1 : vector<8x32xf32>, i32 -> vector<8x32xf32>
    %72 = vector.broadcast %15 : vector<1x32xf32> to vector<8x32xf32>
    %73 = arith.mulf %71, %72 : vector<8x32xf32>
    %c7 = arith.constant 7 : index
    %c0_36 = arith.constant 0 : index
    %c0_37 = arith.constant 0 : index
    %74 = vector.load %arg1[%c7, %c0_36, %c0_37] : memref<12x8x8xf32, #tpu.memory_space<vmem>>, vector<1x8x8xf32>
    %75 = vector.shape_cast %74 : vector<1x8x8xf32> to vector<8x8xf32>
    %cst_38 = arith.constant dense<0.000000e+00> : vector<8x32xf32>
    %76 = tpu.matmul %75, %70, %cst_38 {dimension_numbers = #tpu.dot_dimension_numbers<[1], [0], [0], [1], [0, 0, 1, 1], [], []>} : vector<8x8xf32>, vector<8x32xf32>, vector<8x32xf32> -> vector<8x32xf32>
    %c6 = arith.constant 6 : index
    %c0_39 = arith.constant 0 : index
    %c0_40 = arith.constant 0 : index
    %77 = vector.load %arg1[%c6, %c0_39, %c0_40] : memref<12x8x8xf32, #tpu.memory_space<vmem>>, vector<1x8x8xf32>
    %78 = vector.shape_cast %77 : vector<1x8x8xf32> to vector<8x8xf32>
    %cst_41 = arith.constant dense<0.000000e+00> : vector<8x32xf32>
    %79 = tpu.matmul %78, %73, %cst_41 {dimension_numbers = #tpu.dot_dimension_numbers<[1], [0], [0], [1], [0, 0, 1, 1], [], []>} : vector<8x8xf32>, vector<8x32xf32>, vector<8x32xf32> -> vector<8x32xf32>
    %80 = arith.addf %76, %79 : vector<8x32xf32>
    %c8 = arith.constant 8 : index
    %c0_42 = arith.constant 0 : index
    %c0_43 = arith.constant 0 : index
    %81 = vector.load %arg1[%c8, %c0_42, %c0_43] : memref<12x8x8xf32, #tpu.memory_space<vmem>>, vector<1x8x8xf32>
    %82 = vector.shape_cast %81 : vector<1x8x8xf32> to vector<8x8xf32>
    %cst_44 = arith.constant dense<0.000000e+00> : vector<8x32xf32>
    %83 = tpu.matmul %82, %70, %cst_44 {dimension_numbers = #tpu.dot_dimension_numbers<[1], [0], [0], [1], [0, 0, 1, 1], [], []>} : vector<8x8xf32>, vector<8x32xf32>, vector<8x32xf32> -> vector<8x32xf32>
    %84 = arith.addf %80, %83 : vector<8x32xf32>
    %c3_45 = arith.constant 3 : index
    %c0_46 = arith.constant 0 : index
    %c0_47 = arith.constant 0 : index
    %85 = vector.load %arg2[%c3_45, %c0_46, %c0_47] : memref<6x8x1xf32, #tpu.memory_space<vmem>>, vector<1x8x1xf32>
    %86 = vector.shape_cast %85 : vector<1x8x1xf32> to vector<8x1xf32>
    %87 = vector.broadcast %86 : vector<8x1xf32> to vector<8x32xf32>
    %88 = arith.mulf %84, %87 : vector<8x32xf32>
    %c4_48 = arith.constant 4 : index
    %c0_49 = arith.constant 0 : index
    %c0_50 = arith.constant 0 : index
    %89 = vector.load %arg2[%c4_48, %c0_49, %c0_50] : memref<6x8x1xf32, #tpu.memory_space<vmem>>, vector<1x8x1xf32>
    %90 = vector.shape_cast %89 : vector<1x8x1xf32> to vector<8x1xf32>
    %91 = vector.broadcast %90 : vector<8x1xf32> to vector<8x32xf32>
    %92 = arith.addf %88, %91 : vector<8x32xf32>
    %cst_51 = arith.constant 0.000000e+00 : f32
    %93 = vector.broadcast %cst_51 : f32 to vector<8x32xf32>
    %94 = arith.cmpf ogt, %92, %93 : vector<8x32xf32>
    %cst_52 = arith.constant 0.00999999977 : f32
    %95 = vector.broadcast %cst_52 : f32 to vector<8x32xf32>
    %96 = arith.mulf %95, %92 : vector<8x32xf32>
    %97 = arith.select %94, %92, %96 : vector<8x32xi1>, vector<8x32xf32>
    %c31_i32_53 = arith.constant 31 : i32
    %98 = tpu.dynamic_rotate %70 by %c31_i32_53 dim 1 : vector<8x32xf32>, i32 -> vector<8x32xf32>
    %99 = vector.broadcast %19 : vector<1x32xf32> to vector<8x32xf32>
    %100 = arith.mulf %98, %99 : vector<8x32xf32>
    %c7_54 = arith.constant 7 : index
    %c0_55 = arith.constant 0 : index
    %c0_56 = arith.constant 0 : index
    %101 = vector.load %arg1[%c7_54, %c0_55, %c0_56] : memref<12x8x8xf32, #tpu.memory_space<vmem>>, vector<1x8x8xf32>
    %102 = vector.shape_cast %101 : vector<1x8x8xf32> to vector<8x8xf32>
    %cst_57 = arith.constant dense<0.000000e+00> : vector<8x32xf32>
    %103 = tpu.matmul %102, %70, %cst_57 {dimension_numbers = #tpu.dot_dimension_numbers<[1], [0], [0], [1], [0, 0, 1, 1], [], []>} : vector<8x8xf32>, vector<8x32xf32>, vector<8x32xf32> -> vector<8x32xf32>
    %c6_58 = arith.constant 6 : index
    %c0_59 = arith.constant 0 : index
    %c0_60 = arith.constant 0 : index
    %104 = vector.load %arg1[%c6_58, %c0_59, %c0_60] : memref<12x8x8xf32, #tpu.memory_space<vmem>>, vector<1x8x8xf32>
    %105 = vector.shape_cast %104 : vector<1x8x8xf32> to vector<8x8xf32>
    %cst_61 = arith.constant dense<0.000000e+00> : vector<8x32xf32>
    %106 = tpu.matmul %105, %70, %cst_61 {dimension_numbers = #tpu.dot_dimension_numbers<[1], [0], [0], [1], [0, 0, 1, 1], [], []>} : vector<8x8xf32>, vector<8x32xf32>, vector<8x32xf32> -> vector<8x32xf32>
    %107 = arith.addf %103, %106 : vector<8x32xf32>
    %c8_62 = arith.constant 8 : index
    %c0_63 = arith.constant 0 : index
    %c0_64 = arith.constant 0 : index
    %108 = vector.load %arg1[%c8_62, %c0_63, %c0_64] : memref<12x8x8xf32, #tpu.memory_space<vmem>>, vector<1x8x8xf32>
    %109 = vector.shape_cast %108 : vector<1x8x8xf32> to vector<8x8xf32>
    %cst_65 = arith.constant dense<0.000000e+00> : vector<8x32xf32>
    %110 = tpu.matmul %109, %100, %cst_65 {dimension_numbers = #tpu.dot_dimension_numbers<[1], [0], [0], [1], [0, 0, 1, 1], [], []>} : vector<8x8xf32>, vector<8x32xf32>, vector<8x32xf32> -> vector<8x32xf32>
    %111 = arith.addf %107, %110 : vector<8x32xf32>
    %c3_66 = arith.constant 3 : index
    %c0_67 = arith.constant 0 : index
    %c0_68 = arith.constant 0 : index
    %112 = vector.load %arg2[%c3_66, %c0_67, %c0_68] : memref<6x8x1xf32, #tpu.memory_space<vmem>>, vector<1x8x1xf32>
    %113 = vector.shape_cast %112 : vector<1x8x1xf32> to vector<8x1xf32>
    %114 = vector.broadcast %113 : vector<8x1xf32> to vector<8x32xf32>
    %115 = arith.mulf %111, %114 : vector<8x32xf32>
    %c4_69 = arith.constant 4 : index
    %c0_70 = arith.constant 0 : index
    %c0_71 = arith.constant 0 : index
    %116 = vector.load %arg2[%c4_69, %c0_70, %c0_71] : memref<6x8x1xf32, #tpu.memory_space<vmem>>, vector<1x8x1xf32>
    %117 = vector.shape_cast %116 : vector<1x8x1xf32> to vector<8x1xf32>
    %118 = vector.broadcast %117 : vector<8x1xf32> to vector<8x32xf32>
    %119 = arith.addf %115, %118 : vector<8x32xf32>
    %cst_72 = arith.constant 0.000000e+00 : f32
    %120 = vector.broadcast %cst_72 : f32 to vector<8x32xf32>
    %121 = arith.cmpf ogt, %119, %120 : vector<8x32xf32>
    %cst_73 = arith.constant 0.00999999977 : f32
    %122 = vector.broadcast %cst_73 : f32 to vector<8x32xf32>
    %123 = arith.mulf %122, %119 : vector<8x32xf32>
    %124 = arith.select %121, %119, %123 : vector<8x32xi1>, vector<8x32xf32>
    %125 = arith.addf %0, %70 : vector<8x32xf32>
    %c1_i32_74 = arith.constant 1 : i32
    %126 = tpu.dynamic_rotate %124 by %c1_i32_74 dim 1 : vector<8x32xf32>, i32 -> vector<8x32xf32>
    %127 = vector.broadcast %15 : vector<1x32xf32> to vector<8x32xf32>
    %128 = arith.mulf %126, %127 : vector<8x32xf32>
    %c10 = arith.constant 10 : index
    %c0_75 = arith.constant 0 : index
    %c0_76 = arith.constant 0 : index
    %129 = vector.load %arg1[%c10, %c0_75, %c0_76] : memref<12x8x8xf32, #tpu.memory_space<vmem>>, vector<1x8x8xf32>
    %130 = vector.shape_cast %129 : vector<1x8x8xf32> to vector<8x8xf32>
    %cst_77 = arith.constant dense<0.000000e+00> : vector<8x32xf32>
    %131 = tpu.matmul %130, %97, %cst_77 {dimension_numbers = #tpu.dot_dimension_numbers<[1], [0], [0], [1], [0, 0, 1, 1], [], []>} : vector<8x8xf32>, vector<8x32xf32>, vector<8x32xf32> -> vector<8x32xf32>
    %c9 = arith.constant 9 : index
    %c0_78 = arith.constant 0 : index
    %c0_79 = arith.constant 0 : index
    %132 = vector.load %arg1[%c9, %c0_78, %c0_79] : memref<12x8x8xf32, #tpu.memory_space<vmem>>, vector<1x8x8xf32>
    %133 = vector.shape_cast %132 : vector<1x8x8xf32> to vector<8x8xf32>
    %cst_80 = arith.constant dense<0.000000e+00> : vector<8x32xf32>
    %134 = tpu.matmul %133, %128, %cst_80 {dimension_numbers = #tpu.dot_dimension_numbers<[1], [0], [0], [1], [0, 0, 1, 1], [], []>} : vector<8x8xf32>, vector<8x32xf32>, vector<8x32xf32> -> vector<8x32xf32>
    %135 = arith.addf %131, %134 : vector<8x32xf32>
    %c11 = arith.constant 11 : index
    %c0_81 = arith.constant 0 : index
    %c0_82 = arith.constant 0 : index
    %136 = vector.load %arg1[%c11, %c0_81, %c0_82] : memref<12x8x8xf32, #tpu.memory_space<vmem>>, vector<1x8x8xf32>
    %137 = vector.shape_cast %136 : vector<1x8x8xf32> to vector<8x8xf32>
    %cst_83 = arith.constant dense<0.000000e+00> : vector<8x32xf32>
    %138 = tpu.matmul %137, %124, %cst_83 {dimension_numbers = #tpu.dot_dimension_numbers<[1], [0], [0], [1], [0, 0, 1, 1], [], []>} : vector<8x8xf32>, vector<8x32xf32>, vector<8x32xf32> -> vector<8x32xf32>
    %139 = arith.addf %135, %138 : vector<8x32xf32>
    %c5_84 = arith.constant 5 : index
    %c0_85 = arith.constant 0 : index
    %c0_86 = arith.constant 0 : index
    %140 = vector.load %arg2[%c5_84, %c0_85, %c0_86] : memref<6x8x1xf32, #tpu.memory_space<vmem>>, vector<1x8x1xf32>
    %141 = vector.shape_cast %140 : vector<1x8x1xf32> to vector<8x1xf32>
    %142 = vector.broadcast %141 : vector<8x1xf32> to vector<8x32xf32>
    %143 = arith.addf %139, %142 : vector<8x32xf32>
    %144 = arith.addf %125, %143 : vector<8x32xf32>
    %c0_87 = arith.constant 0 : index
    %c0_88 = arith.constant 0 : index
    %c0_89 = arith.constant 0 : index
    %145 = vector.load %arg3[%c0_87, %c0_88, %c0_89] : memref<2x8x32xf32, #tpu.memory_space<vmem>>, vector<1x8x32xf32>
    %146 = vector.shape_cast %145 : vector<1x8x32xf32> to vector<8x32xf32>
    %147 = vector.shape_cast %144 : vector<8x32xf32> to vector<1x8x32xf32>
    tpu.vector_store %arg3[%c0_87, %c0_88, %c0_89], %147 {strides = array<i32>} : memref<2x8x32xf32, #tpu.memory_space<vmem>>, vector<1x8x32xf32>,
    %c31_i32_90 = arith.constant 31 : i32
    %148 = tpu.dynamic_rotate %97 by %c31_i32_90 dim 1 : vector<8x32xf32>, i32 -> vector<8x32xf32>
    %149 = vector.broadcast %19 : vector<1x32xf32> to vector<8x32xf32>
    %150 = arith.mulf %148, %149 : vector<8x32xf32>
    %c10_91 = arith.constant 10 : index
    %c0_92 = arith.constant 0 : index
    %c0_93 = arith.constant 0 : index
    %151 = vector.load %arg1[%c10_91, %c0_92, %c0_93] : memref<12x8x8xf32, #tpu.memory_space<vmem>>, vector<1x8x8xf32>
    %152 = vector.shape_cast %151 : vector<1x8x8xf32> to vector<8x8xf32>
    %cst_94 = arith.constant dense<0.000000e+00> : vector<8x32xf32>
    %153 = tpu.matmul %152, %124, %cst_94 {dimension_numbers = #tpu.dot_dimension_numbers<[1], [0], [0], [1], [0, 0, 1, 1], [], []>} : vector<8x8xf32>, vector<8x32xf32>, vector<8x32xf32> -> vector<8x32xf32>
    %c9_95 = arith.constant 9 : index
    %c0_96 = arith.constant 0 : index
    %c0_97 = arith.constant 0 : index
    %154 = vector.load %arg1[%c9_95, %c0_96, %c0_97] : memref<12x8x8xf32, #tpu.memory_space<vmem>>, vector<1x8x8xf32>
    %155 = vector.shape_cast %154 : vector<1x8x8xf32> to vector<8x8xf32>
    %cst_98 = arith.constant dense<0.000000e+00> : vector<8x32xf32>
    %156 = tpu.matmul %155, %97, %cst_98 {dimension_numbers = #tpu.dot_dimension_numbers<[1], [0], [0], [1], [0, 0, 1, 1], [], []>} : vector<8x8xf32>, vector<8x32xf32>, vector<8x32xf32> -> vector<8x32xf32>
    %157 = arith.addf %153, %156 : vector<8x32xf32>
    %c11_99 = arith.constant 11 : index
    %c0_100 = arith.constant 0 : index
    %c0_101 = arith.constant 0 : index
    %158 = vector.load %arg1[%c11_99, %c0_100, %c0_101] : memref<12x8x8xf32, #tpu.memory_space<vmem>>, vector<1x8x8xf32>
    %159 = vector.shape_cast %158 : vector<1x8x8xf32> to vector<8x8xf32>
    %cst_102 = arith.constant dense<0.000000e+00> : vector<8x32xf32>
    %160 = tpu.matmul %159, %150, %cst_102 {dimension_numbers = #tpu.dot_dimension_numbers<[1], [0], [0], [1], [0, 0, 1, 1], [], []>} : vector<8x8xf32>, vector<8x32xf32>, vector<8x32xf32> -> vector<8x32xf32>
    %161 = arith.addf %157, %160 : vector<8x32xf32>
    %c5_103 = arith.constant 5 : index
    %c0_104 = arith.constant 0 : index
    %c0_105 = arith.constant 0 : index
    %162 = vector.load %arg2[%c5_103, %c0_104, %c0_105] : memref<6x8x1xf32, #tpu.memory_space<vmem>>, vector<1x8x1xf32>
    %163 = vector.shape_cast %162 : vector<1x8x1xf32> to vector<8x1xf32>
    %164 = vector.broadcast %163 : vector<8x1xf32> to vector<8x32xf32>
    %165 = arith.addf %161, %164 : vector<8x32xf32>
    %166 = arith.addf %125, %165 : vector<8x32xf32>
    %c1_106 = arith.constant 1 : index
    %c0_107 = arith.constant 0 : index
    %c0_108 = arith.constant 0 : index
    %167 = vector.load %arg3[%c1_106, %c0_107, %c0_108] : memref<2x8x32xf32, #tpu.memory_space<vmem>>, vector<1x8x32xf32>
    %168 = vector.shape_cast %167 : vector<1x8x32xf32> to vector<8x32xf32>
    %169 = vector.shape_cast %166 : vector<8x32xf32> to vector<1x8x32xf32>
    tpu.vector_store %arg3[%c1_106, %c0_107, %c0_108], %169 {strides = array<i32>} : memref<2x8x32xf32, #tpu.memory_space<vmem>>, vector<1x8x32xf32>,
    return
  }
}

</mosaic_0001>

<llo_original>
// kernel: tpu_custom_call.1
$region0: #{tpu_custom_call.1}
  #allocation0 [shape = 'u32[]', space=smem, size = 0x4, offset = 0x4, fixed_abs, tag = 'smem constant byte address 0x4 - core index']
  #allocation1 [shape = 'u32[144,128]{1,0:T(1,128)}', space=vmem, size = 0x12000, scoped, tag = 'internal scratch']
  %s0 = inlined_call_operand.vmem [shape: f32[8,32], index: 0, kind: input, shape index: {}]
  %s1 = inlined_call_operand.vmem [shape: f32[12,8,8], index: 1, kind: input, shape index: {}]
  %s2 = inlined_call_operand.vmem [shape: f32[6,8,1], index: 2, kind: input, shape index: {}]
  %s3 = inlined_call_operand.hbm [shape: f32[2,8,32], index: 3, kind: output, shape index: {}]
  %s4 = sld [smem:[#allocation0]]
  $region22: #{tpu_custom_call.1} parent=0
    _
  %s6 = ssub.s32 1, %s4
  %s7 = scalar_select 0, %s6, %s4
  $region1: #{tpu_custom_call.1} parent=0
    #allocation2 [shape = 'u8[8192]{0}', space=vmem, size = 0x2000, scoped, tag = 'output window, operand 0, single buffered']
    #allocation3 [shape = 's32[1]{0}', space=sflag, size = 0x4, scoped, tag = 'scoped memory for tpu_custom_call.1']
    %8 = vsyncpa [#allocation3], 0
    // Predicated region
    $region2: #{tpu_custom_call.1} parent=1 // pred_check
      _
    $region3: #{tpu_custom_call.1} parent=1 // pred_check_branch
      %10 = sbr.rel (0) target = $region5
    $region4: #{tpu_custom_call.1} parent=1 // pred_region
      _
    $region5: #{tpu_custom_call.1} parent=1 // pred_fallthru
      _
    // Predicated region
    $region6: #{tpu_custom_call.1} parent=1 // pred_check
      _
    $region7: #{tpu_custom_call.1} parent=1 // pred_check_branch
      %12 = sbr.rel (0) target = $region9
    $region8: #{tpu_custom_call.1} parent=1 // pred_region
      _
    $region9: #{tpu_custom_call.1} parent=1 // pred_fallthru
      _
    // Predicated region
    $region10: #{tpu_custom_call.1} parent=1 // pred_check
      _
    $region11: #{tpu_custom_call.1} parent=1 // pred_check_branch
      %14 = sbr.rel (0) target = $region13
    $region12: #{tpu_custom_call.1} parent=1 // pred_region
      _
    $region13: #{tpu_custom_call.1} parent=1 // pred_fallthru
      _
    %v15 = vld [vmem:[%s0] sm:$0xff]
    %v16 = vlaneseq
    %v17 = vand.u32 %v16, 127
    %vm18 = vcmp.eq.s32.totalorder %v17, 0
    %vm19 = vcmp.eq.s32.totalorder %v17, 15
    %vm20 = vcmp.eq.s32.totalorder %v17, 16
    %vm21 = vmor %vm18, %vm20
    %vm22 = vcmp.eq.s32.totalorder %v17, 31
    %vm23 = vmor %vm19, %vm22
    %v24 = vsel %vm21, 1, 0
    %v25 = vcvt.s32.f32 %v24
    %v26 = vsub.f32 1.0, %v25
    %v27 = vsel %vm23, 1, 0
    %v28 = vcvt.s32.f32 %v27
    %v29 = vsub.f32 1.0, %v28
    %vm30 = vcmask 1047808
    %31 = vrot.lane.b32.xlu0 %v15, 32
    %v32 = vpop.permute.xlu0 %31
    %v33 = vsel %vm30, %v32, %v15
    %34 = vrot.lane.b32.xlu0 %v33, 32
    %v35 = vpop.permute.xlu0 %34
    %v36 = vsel %vm30, %v35, %v15
    %38 = vrot.lane.b32.xlu0 %v26, 31
    %v39 = vpop.permute.xlu0 %38
    %v41 = vmul.f32 %v36, %v39
    %43 = vrot.lane.b32.xlu0 %v29, 1
    %v44 = vpop.permute.xlu0 %43
    %v46 = vmul.f32 %v36, %v44
    %s47 = scalar_lea.vmem %s1, 8
    %v48 = vld [vmem:[%s47] sm:$0xff]
    %v49 = vld [vmem:[%s1] sm:$0xff]
    %51 = vrot.lane.b32.xlu0 %v41, 97
    %v52 = vpop.permute.xlu0 %51
    %vm54 = vcmask 64512
    %v56 = vsel %vm54, %v49, 0
    %58 = vmatprep.subr.mxu0 0.0
    %59 = vmatpush1.msra.mxu0 0.0
    %60 = vmatprep.subr.mxu0 0.0
    %61 = vmatpush1.msra.mxu0 0.0
    %62 = vmatprep.subr.mxu0 0.0
    %63 = vmatpush1.msra.mxu0 0.0
    %64 = vmatprep.subr.mxu0 0.0
    %65 = vmatpush1.msra.mxu0 0.0
    %66 = vmatprep.subr.mxu0 0.0
    %67 = vmatpush1.msra.mxu0 0.0
    %68 = vmatprep.subr.mxu0 0.0
    %69 = vmatpush1.msra.mxu0 0.0
    %70 = vmatprep.subr.mxu0 0.0
    %71 = vmatpush1.msra.mxu0 0.0
    %72 = vmatprep.subr.mxu0 0.0
    %73 = vmatpush1.msra.mxu0 0.0
    %74 = vmatprep.subr.mxu0 0.0
    %75 = vmatpush1.msra.mxu0 0.0
    %76 = vmatprep.subr.mxu0 0.0
    %77 = vmatpush1.msra.mxu0 0.0
    %78 = vmatprep.subr.mxu0 0.0
    %79 = vmatpush1.msra.mxu0 0.0
    %80 = vmatprep.subr.mxu0 0.0
    %81 = vmatpush1.msra.mxu0 0.0
    %82 = vmatprep.subr.mxu0 0.0
    %83 = vmatpush1.msra.mxu0 0.0
    %84 = vmatprep.subr.mxu0 0.0
    %85 = vmatpush1.msra.mxu0 0.0
    %86 = vmatprep.subr.mxu0 0.0
    %87 = vmatpush1.msra.mxu0 0.0
    %88 = vmatprep.subr.mxu0 0.0
    %89 = vmatpush1.msra.mxu0 %v52
    %90 = vmatprep.subr.mxu0 0.0
    %91 = vmatpush2.msra.mxu0 0.0
    %92 = vmatprep.subr.mxu0 0.0
    %93 = vmatpush2.msra.mxu0 0.0
    %94 = vmatprep.subr.mxu0 0.0
    %95 = vmatpush2.msra.mxu0 0.0
    %96 = vmatprep.subr.mxu0 0.0
    %97 = vmatpush2.msra.mxu0 0.0
    %98 = vmatprep.subr.mxu0 0.0
    %99 = vmatpush2.msra.mxu0 0.0
    %100 = vmatprep.subr.mxu0 0.0
    %101 = vmatpush2.msra.mxu0 0.0
    %102 = vmatprep.subr.mxu0 0.0
    %103 = vmatpush2.msra.mxu0 0.0
    %104 = vmatprep.subr.mxu0 0.0
    %105 = vmatpush2.msra.mxu0 0.0
    %106 = vmatprep.subr.mxu0 0.0
    %107 = vmatpush2.msra.mxu0 0.0
    %108 = vmatprep.subr.mxu0 0.0
    %109 = vmatpush2.msra.mxu0 0.0
    %110 = vmatprep.subr.mxu0 0.0
    %111 = vmatpush2.msra.mxu0 0.0
    %112 = vmatprep.subr.mxu0 0.0
    %113 = vmatpush2.msra.mxu0 0.0
    %114 = vmatprep.subr.mxu0 0.0
    %115 = vmatpush2.msra.mxu0 0.0
    %116 = vmatprep.subr.mxu0 0.0
    %117 = vmatpush2.msra.mxu0 0.0
    %118 = vmatprep.subr.mxu0 0.0
    %119 = vmatpush2.msra.mxu0 0.0
    %120 = vmatprep.subr.mxu0 0.0
    %121 = vmatpush2.msra.mxu0 0.0
    %122 = vmatprep.mubr.f32.mxu0 0.0
    %123 = vmatmul.mubr.f32.gmra.mxu0 %v56
    %v124 = vpop.f32.mrf.mxu0
    %v125 = vadd.f32 0.0, %v124
    %v126 = vpop.f32.mrf.mxu0
    %127 = vdwg.mxu0
    %v129 = vsel %vm54, %v48, 0
    %131 = vmatprep.subr.mxu0 0.0
    %132 = vmatpush1.msra.mxu0 0.0
    %133 = vmatprep.subr.mxu0 0.0
    %134 = vmatpush1.msra.mxu0 0.0
    %135 = vmatprep.subr.mxu0 0.0
    %136 = vmatpush1.msra.mxu0 0.0
    %137 = vmatprep.subr.mxu0 0.0
    %138 = vmatpush1.msra.mxu0 0.0
    %139 = vmatprep.subr.mxu0 0.0
    %140 = vmatpush1.msra.mxu0 0.0
    %141 = vmatprep.subr.mxu0 0.0
    %142 = vmatpush1.msra.mxu0 0.0
    %143 = vmatprep.subr.mxu0 0.0
    %144 = vmatpush1.msra.mxu0 0.0
    %145 = vmatprep.subr.mxu0 0.0
    %146 = vmatpush1.msra.mxu0 0.0
    %147 = vmatprep.subr.mxu0 0.0
    %148 = vmatpush1.msra.mxu0 0.0
    %149 = vmatprep.subr.mxu0 0.0
    %150 = vmatpush1.msra.mxu0 0.0
    %151 = vmatprep.subr.mxu0 0.0
    %152 = vmatpush1.msra.mxu0 0.0
    %153 = vmatprep.subr.mxu0 0.0
    %154 = vmatpush1.msra.mxu0 0.0
    %155 = vmatprep.subr.mxu0 0.0
    %156 = vmatpush1.msra.mxu0 0.0
    %157 = vmatprep.subr.mxu0 0.0
    %158 = vmatpush1.msra.mxu0 0.0
    %159 = vmatprep.subr.mxu0 0.0
    %160 = vmatpush1.msra.mxu0 0.0
    %161 = vmatprep.subr.mxu0 0.0
    %162 = vmatpush1.msra.mxu0 %v15
    %163 = vmatprep.subr.mxu0 0.0
    %164 = vmatpush2.msra.mxu0 0.0
    %165 = vmatprep.subr.mxu0 0.0
    %166 = vmatpush2.msra.mxu0 0.0
    %167 = vmatprep.subr.mxu0 0.0
    %168 = vmatpush2.msra.mxu0 0.0
    %169 = vmatprep.subr.mxu0 0.0
    %170 = vmatpush2.msra.mxu0 0.0
    %171 = vmatprep.subr.mxu0 0.0
    %172 = vmatpush2.msra.mxu0 0.0
    %173 = vmatprep.subr.mxu0 0.0
    %174 = vmatpush2.msra.mxu0 0.0
    %175 = vmatprep.subr.mxu0 0.0
    %176 = vmatpush2.msra.mxu0 0.0
    %177 = vmatprep.subr.mxu0 0.0
    %178 = vmatpush2.msra.mxu0 0.0
    %179 = vmatprep.subr.mxu0 0.0
    %180 = vmatpush2.msra.mxu0 0.0
    %181 = vmatprep.subr.mxu0 0.0
    %182 = vmatpush2.msra.mxu0 0.0
    %183 = vmatprep.subr.mxu0 0.0
    %184 = vmatpush2.msra.mxu0 0.0
    %185 = vmatprep.subr.mxu0 0.0
    %186 = vmatpush2.msra.mxu0 0.0
    %187 = vmatprep.subr.mxu0 0.0
    %188 = vmatpush2.msra.mxu0 0.0
    %189 = vmatprep.subr.mxu0 0.0
    %190 = vmatpush2.msra.mxu0 0.0
    %191 = vmatprep.subr.mxu0 0.0
    %192 = vmatpush2.msra.mxu0 0.0
    %193 = vmatprep.subr.mxu0 0.0
    %194 = vmatpush2.msra.mxu0 0.0
    %195 = vmatprep.mubr.f32.mxu0 0.0
    %196 = vmatmul.mubr.f32.gmra.mxu0 %v129
    %v197 = vpop.f32.mrf.mxu0
    %v198 = vadd.f32 %v125, %v197
    %v199 = vpop.f32.mrf.mxu0
    %200 = vdwg.mxu0
    %s201 = scalar_lea.vmem %s1, 16
    %v202 = vld [vmem:[%s201] sm:$0xff]
    %204 = vrot.lane.b32.xlu0 %v46, 127
    %v205 = vpop.permute.xlu0 %204
    %v208 = vsel %vm54, %v202, 0
    %210 = vmatprep.subr.mxu0 0.0
    %211 = vmatpush1.msra.mxu0 0.0
    %212 = vmatprep.subr.mxu0 0.0
    %213 = vmatpush1.msra.mxu0 0.0
    %214 = vmatprep.subr.mxu0 0.0
    %215 = vmatpush1.msra.mxu0 0.0
    %216 = vmatprep.subr.mxu0 0.0
    %217 = vmatpush1.msra.mxu0 0.0
    %218 = vmatprep.subr.mxu0 0.0
    %219 = vmatpush1.msra.mxu0 0.0
    %220 = vmatprep.subr.mxu0 0.0
    %221 = vmatpush1.msra.mxu0 0.0
    %222 = vmatprep.subr.mxu0 0.0
    %223 = vmatpush1.msra.mxu0 0.0
    %224 = vmatprep.subr.mxu0 0.0
    %225 = vmatpush1.msra.mxu0 0.0
    %226 = vmatprep.subr.mxu0 0.0
    %227 = vmatpush1.msra.mxu0 0.0
    %228 = vmatprep.subr.mxu0 0.0
    %229 = vmatpush1.msra.mxu0 0.0
    %230 = vmatprep.subr.mxu0 0.0
    %231 = vmatpush1.msra.mxu0 0.0
    %232 = vmatprep.subr.mxu0 0.0
    %233 = vmatpush1.msra.mxu0 0.0
    %234 = vmatprep.subr.mxu0 0.0
    %235 = vmatpush1.msra.mxu0 0.0
    %236 = vmatprep.subr.mxu0 0.0
    %237 = vmatpush1.msra.mxu0 0.0
    %238 = vmatprep.subr.mxu0 0.0
    %239 = vmatpush1.msra.mxu0 0.0
    %240 = vmatprep.subr.mxu0 0.0
    %241 = vmatpush1.msra.mxu0 %v205
    %242 = vmatprep.subr.mxu0 0.0
    %243 = vmatpush2.msra.mxu0 0.0
    %244 = vmatprep.subr.mxu0 0.0
    %245 = vmatpush2.msra.mxu0 0.0
    %246 = vmatprep.subr.mxu0 0.0
    %247 = vmatpush2.msra.mxu0 0.0
    %248 = vmatprep.subr.mxu0 0.0
    %249 = vmatpush2.msra.mxu0 0.0
    %250 = vmatprep.subr.mxu0 0.0
    %251 = vmatpush2.msra.mxu0 0.0
    %252 = vmatprep.subr.mxu0 0.0
    %253 = vmatpush2.msra.mxu0 0.0
    %254 = vmatprep.subr.mxu0 0.0
    %255 = vmatpush2.msra.mxu0 0.0
    %256 = vmatprep.subr.mxu0 0.0
    %257 = vmatpush2.msra.mxu0 0.0
    %258 = vmatprep.subr.mxu0 0.0
    %259 = vmatpush2.msra.mxu0 0.0
    %260 = vmatprep.subr.mxu0 0.0
    %261 = vmatpush2.msra.mxu0 0.0
    %262 = vmatprep.subr.mxu0 0.0
    %263 = vmatpush2.msra.mxu0 0.0
    %264 = vmatprep.subr.mxu0 0.0
    %265 = vmatpush2.msra.mxu0 0.0
    %266 = vmatprep.subr.mxu0 0.0
    %267 = vmatpush2.msra.mxu0 0.0
    %268 = vmatprep.subr.mxu0 0.0
    %269 = vmatpush2.msra.mxu0 0.0
    %270 = vmatprep.subr.mxu0 0.0
    %271 = vmatpush2.msra.mxu0 0.0
    %272 = vmatprep.subr.mxu0 0.0
    %273 = vmatpush2.msra.mxu0 0.0
    %274 = vmatprep.mubr.f32.mxu0 0.0
    %275 = vmatmul.mubr.f32.gmra.mxu0 %v208
    %v276 = vpop.f32.mrf.mxu0
    %v277 = vadd.f32 0.0, %v276
    %v278 = vpop.f32.mrf.mxu0
    %279 = vdwg.mxu0
    %v280 = vadd.f32 %v198, %v277
    %v281 = vld [vmem:[%s2] sm:$0xff]
    %283 = vset.pattern.permute.xlu0 0
    %284 = vperm.xlu0 %283, %v281
    %v285 = vpop.permute.xlu0 %284
    %v287 = vmul.f32 %v280, %v285
    %s288 = scalar_lea.vmem %s2, 8
    %v289 = vld [vmem:[%s288] sm:$0xff]
    %291 = vset.pattern.permute.xlu0 0
    %292 = vperm.xlu0 %291, %v289
    %v293 = vpop.permute.xlu0 %292
    %v295 = vadd.f32 %v287, %v293
    %vm296 = vcmp.gt.f32.partialorder %v295, 0.0
    %v297 = vmul.f32 %v295, 0.01
    %v298 = vsel %vm296, %v295, %v297
    %299 = vrot.lane.b32.xlu0 %v298, 32
    %v300 = vpop.permute.xlu0 %299
    %v301 = vsel %vm30, %v300, %v298
    %302 = vrot.lane.b32.xlu0 %v301, 32
    %v303 = vpop.permute.xlu0 %302
    %v304 = vsel %vm30, %v303, %v298
    %v305 = vmul.f32 %v304, %v39
    %v306 = vmul.f32 %v304, %v44
    %s307 = scalar_lea.vmem %s1, 32
    %v308 = vld [vmem:[%s307] sm:$0xff]
    %s309 = scalar_lea.vmem %s1, 24
    %v310 = vld [vmem:[%s309] sm:$0xff]
    %312 = vrot.lane.b32.xlu0 %v305, 97
    %v313 = vpop.permute.xlu0 %312
    %v316 = vsel %vm54, %v310, 0
    %318 = vmatprep.subr.mxu0 0.0
    %319 = vmatpush1.msra.mxu0 0.0
    %320 = vmatprep.subr.mxu0 0.0
    %321 = vmatpush1.msra.mxu0 0.0
    %322 = vmatprep.subr.mxu0 0.0
    %323 = vmatpush1.msra.mxu0 0.0
    %324 = vmatprep.subr.mxu0 0.0
    %325 = vmatpush1.msra.mxu0 0.0
    %326 = vmatprep.subr.mxu0 0.0
    %327 = vmatpush1.msra.mxu0 0.0
    %328 = vmatprep.subr.mxu0 0.0
    %329 = vmatpush1.msra.mxu0 0.0
    %330 = vmatprep.subr.mxu0 0.0
    %331 = vmatpush1.msra.mxu0 0.0
    %332 = vmatprep.subr.mxu0 0.0
    %333 = vmatpush1.msra.mxu0 0.0
    %334 = vmatprep.subr.mxu0 0.0
    %335 = vmatpush1.msra.mxu0 0.0
    %336 = vmatprep.subr.mxu0 0.0
    %337 = vmatpush1.msra.mxu0 0.0
    %338 = vmatprep.subr.mxu0 0.0
    %339 = vmatpush1.msra.mxu0 0.0
    %340 = vmatprep.subr.mxu0 0.0
    %341 = vmatpush1.msra.mxu0 0.0
    %342 = vmatprep.subr.mxu0 0.0
    %343 = vmatpush1.msra.mxu0 0.0
    %344 = vmatprep.subr.mxu0 0.0
    %345 = vmatpush1.msra.mxu0 0.0
    %346 = vmatprep.subr.mxu0 0.0
    %347 = vmatpush1.msra.mxu0 0.0
    %348 = vmatprep.subr.mxu0 0.0
    %349 = vmatpush1.msra.mxu0 %v313
    %350 = vmatprep.subr.mxu0 0.0
    %351 = vmatpush2.msra.mxu0 0.0
    %352 = vmatprep.subr.mxu0 0.0
    %353 = vmatpush2.msra.mxu0 0.0
    %354 = vmatprep.subr.mxu0 0.0
    %355 = vmatpush2.msra.mxu0 0.0
    %356 = vmatprep.subr.mxu0 0.0
    %357 = vmatpush2.msra.mxu0 0.0
    %358 = vmatprep.subr.mxu0 0.0
    %359 = vmatpush2.msra.mxu0 0.0
    %360 = vmatprep.subr.mxu0 0.0
    %361 = vmatpush2.msra.mxu0 0.0
    %362 = vmatprep.subr.mxu0 0.0
    %363 = vmatpush2.msra.mxu0 0.0
    %364 = vmatprep.subr.mxu0 0.0
    %365 = vmatpush2.msra.mxu0 0.0
    %366 = vmatprep.subr.mxu0 0.0
    %367 = vmatpush2.msra.mxu0 0.0
    %368 = vmatprep.subr.mxu0 0.0
    %369 = vmatpush2.msra.mxu0 0.0
    %370 = vmatprep.subr.mxu0 0.0
    %371 = vmatpush2.msra.mxu0 0.0
    %372 = vmatprep.subr.mxu0 0.0
    %373 = vmatpush2.msra.mxu0 0.0
    %374 = vmatprep.subr.mxu0 0.0
    %375 = vmatpush2.msra.mxu0 0.0
    %376 = vmatprep.subr.mxu0 0.0
    %377 = vmatpush2.msra.mxu0 0.0
    %378 = vmatprep.subr.mxu0 0.0
    %379 = vmatpush2.msra.mxu0 0.0
    %380 = vmatprep.subr.mxu0 0.0
    %381 = vmatpush2.msra.mxu0 0.0
    %382 = vmatprep.mubr.f32.mxu0 0.0
    %383 = vmatmul.mubr.f32.gmra.mxu0 %v316
    %v384 = vpop.f32.mrf.mxu0
    %v385 = vadd.f32 0.0, %v384
    %v386 = vpop.f32.mrf.mxu0
    %387 = vdwg.mxu0
    %v389 = vsel %vm54, %v308, 0
    %391 = vmatprep.subr.mxu0 0.0
    %392 = vmatpush1.msra.mxu0 0.0
    %393 = vmatprep.subr.mxu0 0.0
    %394 = vmatpush1.msra.mxu0 0.0
    %395 = vmatprep.subr.mxu0 0.0
    %396 = vmatpush1.msra.mxu0 0.0
    %397 = vmatprep.subr.mxu0 0.0
    %398 = vmatpush1.msra.mxu0 0.0
    %399 = vmatprep.subr.mxu0 0.0
    %400 = vmatpush1.msra.mxu0 0.0
    %401 = vmatprep.subr.mxu0 0.0
    %402 = vmatpush1.msra.mxu0 0.0
    %403 = vmatprep.subr.mxu0 0.0
    %404 = vmatpush1.msra.mxu0 0.0
    %405 = vmatprep.subr.mxu0 0.0
    %406 = vmatpush1.msra.mxu0 0.0
    %407 = vmatprep.subr.mxu0 0.0
    %408 = vmatpush1.msra.mxu0 0.0
    %409 = vmatprep.subr.mxu0 0.0
    %410 = vmatpush1.msra.mxu0 0.0
    %411 = vmatprep.subr.mxu0 0.0
    %412 = vmatpush1.msra.mxu0 0.0
    %413 = vmatprep.subr.mxu0 0.0
    %414 = vmatpush1.msra.mxu0 0.0
    %415 = vmatprep.subr.mxu0 0.0
    %416 = vmatpush1.msra.mxu0 0.0
    %417 = vmatprep.subr.mxu0 0.0
    %418 = vmatpush1.msra.mxu0 0.0
    %419 = vmatprep.subr.mxu0 0.0
    %420 = vmatpush1.msra.mxu0 0.0
    %421 = vmatprep.subr.mxu0 0.0
    %422 = vmatpush1.msra.mxu0 %v298
    %423 = vmatprep.subr.mxu0 0.0
    %424 = vmatpush2.msra.mxu0 0.0
    %425 = vmatprep.subr.mxu0 0.0
    %426 = vmatpush2.msra.mxu0 0.0
    %427 = vmatprep.subr.mxu0 0.0
    %428 = vmatpush2.msra.mxu0 0.0
    %429 = vmatprep.subr.mxu0 0.0
    %430 = vmatpush2.msra.mxu0 0.0
    %431 = vmatprep.subr.mxu0 0.0
    %432 = vmatpush2.msra.mxu0 0.0
    %433 = vmatprep.subr.mxu0 0.0
    %434 = vmatpush2.msra.mxu0 0.0
    %435 = vmatprep.subr.mxu0 0.0
    %436 = vmatpush2.msra.mxu0 0.0
    %437 = vmatprep.subr.mxu0 0.0
    %438 = vmatpush2.msra.mxu0 0.0
    %439 = vmatprep.subr.mxu0 0.0
    %440 = vmatpush2.msra.mxu0 0.0
    %441 = vmatprep.subr.mxu0 0.0
    %442 = vmatpush2.msra.mxu0 0.0
    %443 = vmatprep.subr.mxu0 0.0
    %444 = vmatpush2.msra.mxu0 0.0
    %445 = vmatprep.subr.mxu0 0.0
    %446 = vmatpush2.msra.mxu0 0.0
    %447 = vmatprep.subr.mxu0 0.0
    %448 = vmatpush2.msra.mxu0 0.0
    %449 = vmatprep.subr.mxu0 0.0
    %450 = vmatpush2.msra.mxu0 0.0
    %451 = vmatprep.subr.mxu0 0.0
    %452 = vmatpush2.msra.mxu0 0.0
    %453 = vmatprep.subr.mxu0 0.0
    %454 = vmatpush2.msra.mxu0 0.0
    %455 = vmatprep.mubr.f32.mxu0 0.0
    %456 = vmatmul.mubr.f32.gmra.mxu0 %v389
    %v457 = vpop.f32.mrf.mxu0
    %v458 = vadd.f32 %v385, %v457
    %v459 = vpop.f32.mrf.mxu0
    %460 = vdwg.mxu0
    %s461 = scalar_lea.vmem %s1, 40
    %v462 = vld [vmem:[%s461] sm:$0xff]
    %464 = vrot.lane.b32.xlu0 %v306, 127
    %v465 = vpop.permute.xlu0 %464
    %v468 = vsel %vm54, %v462, 0
    %470 = vmatprep.subr.mxu0 0.0
    %471 = vmatpush1.msra.mxu0 0.0
    %472 = vmatprep.subr.mxu0 0.0
    %473 = vmatpush1.msra.mxu0 0.0
    %474 = vmatprep.subr.mxu0 0.0
    %475 = vmatpush1.msra.mxu0 0.0
    %476 = vmatprep.subr.mxu0 0.0
    %477 = vmatpush1.msra.mxu0 0.0
    %478 = vmatprep.subr.mxu0 0.0
    %479 = vmatpush1.msra.mxu0 0.0
    %480 = vmatprep.subr.mxu0 0.0
    %481 = vmatpush1.msra.mxu0 0.0
    %482 = vmatprep.subr.mxu0 0.0
    %483 = vmatpush1.msra.mxu0 0.0
    %484 = vmatprep.subr.mxu0 0.0
    %485 = vmatpush1.msra.mxu0 0.0
    %486 = vmatprep.subr.mxu0 0.0
    %487 = vmatpush1.msra.mxu0 0.0
    %488 = vmatprep.subr.mxu0 0.0
    %489 = vmatpush1.msra.mxu0 0.0
    %490 = vmatprep.subr.mxu0 0.0
    %491 = vmatpush1.msra.mxu0 0.0
    %492 = vmatprep.subr.mxu0 0.0
    %493 = vmatpush1.msra.mxu0 0.0
    %494 = vmatprep.subr.mxu0 0.0
    %495 = vmatpush1.msra.mxu0 0.0
    %496 = vmatprep.subr.mxu0 0.0
    %497 = vmatpush1.msra.mxu0 0.0
    %498 = vmatprep.subr.mxu0 0.0
    %499 = vmatpush1.msra.mxu0 0.0
    %500 = vmatprep.subr.mxu0 0.0
    %501 = vmatpush1.msra.mxu0 %v465
    %502 = vmatprep.subr.mxu0 0.0
    %503 = vmatpush2.msra.mxu0 0.0
    %504 = vmatprep.subr.mxu0 0.0
    %505 = vmatpush2.msra.mxu0 0.0
    %506 = vmatprep.subr.mxu0 0.0
    %507 = vmatpush2.msra.mxu0 0.0
    %508 = vmatprep.subr.mxu0 0.0
    %509 = vmatpush2.msra.mxu0 0.0
    %510 = vmatprep.subr.mxu0 0.0
    %511 = vmatpush2.msra.mxu0 0.0
    %512 = vmatprep.subr.mxu0 0.0
    %513 = vmatpush2.msra.mxu0 0.0
    %514 = vmatprep.subr.mxu0 0.0
    %515 = vmatpush2.msra.mxu0 0.0
    %516 = vmatprep.subr.mxu0 0.0
    %517 = vmatpush2.msra.mxu0 0.0
    %518 = vmatprep.subr.mxu0 0.0
    %519 = vmatpush2.msra.mxu0 0.0
    %520 = vmatprep.subr.mxu0 0.0
    %521 = vmatpush2.msra.mxu0 0.0
    %522 = vmatprep.subr.mxu0 0.0
    %523 = vmatpush2.msra.mxu0 0.0
    %524 = vmatprep.subr.mxu0 0.0
    %525 = vmatpush2.msra.mxu0 0.0
    %526 = vmatprep.subr.mxu0 0.0
    %527 = vmatpush2.msra.mxu0 0.0
    %528 = vmatprep.subr.mxu0 0.0
    %529 = vmatpush2.msra.mxu0 0.0
    %530 = vmatprep.subr.mxu0 0.0
    %531 = vmatpush2.msra.mxu0 0.0
    %532 = vmatprep.subr.mxu0 0.0
    %533 = vmatpush2.msra.mxu0 0.0
    %534 = vmatprep.mubr.f32.mxu0 0.0
    %535 = vmatmul.mubr.f32.gmra.mxu0 %v468
    %v536 = vpop.f32.mrf.mxu0
    %v537 = vadd.f32 0.0, %v536
    %v538 = vpop.f32.mrf.mxu0
    %539 = vdwg.mxu0
    %v540 = vadd.f32 %v458, %v537
    %s541 = scalar_lea.vmem %s2, 16
    %v542 = vld [vmem:[%s541] sm:$0xff]
    %544 = vset.pattern.permute.xlu0 0
    %545 = vperm.xlu0 %544, %v542
    %v546 = vpop.permute.xlu0 %545
    %v548 = vadd.f32 %v540, %v546
    %549 = vrot.lane.b32.xlu0 %v548, 32
    %v550 = vpop.permute.xlu0 %549
    %v551 = vsel %vm30, %v550, %v548
    %552 = vrot.lane.b32.xlu0 %v551, 32
    %v553 = vpop.permute.xlu0 %552
    %v554 = vsel %vm30, %v553, %v548
    %v555 = vmul.f32 %v554, %v39
    %s556 = scalar_lea.vmem %s1, 56
    %v557 = vld [vmem:[%s556] sm:$0xff]
    %s558 = scalar_lea.vmem %s1, 48
    %v559 = vld [vmem:[%s558] sm:$0xff]
    %561 = vrot.lane.b32.xlu0 %v555, 97
    %v562 = vpop.permute.xlu0 %561
    %v565 = vsel %vm54, %v559, 0
    %567 = vmatprep.subr.mxu0 0.0
    %568 = vmatpush1.msra.mxu0 0.0
    %569 = vmatprep.subr.mxu0 0.0
    %570 = vmatpush1.msra.mxu0 0.0
    %571 = vmatprep.subr.mxu0 0.0
    %572 = vmatpush1.msra.mxu0 0.0
    %573 = vmatprep.subr.mxu0 0.0
    %574 = vmatpush1.msra.mxu0 0.0
    %575 = vmatprep.subr.mxu0 0.0
    %576 = vmatpush1.msra.mxu0 0.0
    %577 = vmatprep.subr.mxu0 0.0
    %578 = vmatpush1.msra.mxu0 0.0
    %579 = vmatprep.subr.mxu0 0.0
    %580 = vmatpush1.msra.mxu0 0.0
    %581 = vmatprep.subr.mxu0 0.0
    %582 = vmatpush1.msra.mxu0 0.0
    %583 = vmatprep.subr.mxu0 0.0
    %584 = vmatpush1.msra.mxu0 0.0
    %585 = vmatprep.subr.mxu0 0.0
    %586 = vmatpush1.msra.mxu0 0.0
    %587 = vmatprep.subr.mxu0 0.0
    %588 = vmatpush1.msra.mxu0 0.0
    %589 = vmatprep.subr.mxu0 0.0
    %590 = vmatpush1.msra.mxu0 0.0
    %591 = vmatprep.subr.mxu0 0.0
    %592 = vmatpush1.msra.mxu0 0.0
    %593 = vmatprep.subr.mxu0 0.0
    %594 = vmatpush1.msra.mxu0 0.0
    %595 = vmatprep.subr.mxu0 0.0
    %596 = vmatpush1.msra.mxu0 0.0
    %597 = vmatprep.subr.mxu0 0.0
    %598 = vmatpush1.msra.mxu0 %v562
    %599 = vmatprep.subr.mxu0 0.0
    %600 = vmatpush2.msra.mxu0 0.0
    %601 = vmatprep.subr.mxu0 0.0
    %602 = vmatpush2.msra.mxu0 0.0
    %603 = vmatprep.subr.mxu0 0.0
    %604 = vmatpush2.msra.mxu0 0.0
    %605 = vmatprep.subr.mxu0 0.0
    %606 = vmatpush2.msra.mxu0 0.0
    %607 = vmatprep.subr.mxu0 0.0
    %608 = vmatpush2.msra.mxu0 0.0
    %609 = vmatprep.subr.mxu0 0.0
    %610 = vmatpush2.msra.mxu0 0.0
    %611 = vmatprep.subr.mxu0 0.0
    %612 = vmatpush2.msra.mxu0 0.0
    %613 = vmatprep.subr.mxu0 0.0
    %614 = vmatpush2.msra.mxu0 0.0
    %615 = vmatprep.subr.mxu0 0.0
    %616 = vmatpush2.msra.mxu0 0.0
    %617 = vmatprep.subr.mxu0 0.0
    %618 = vmatpush2.msra.mxu0 0.0
    %619 = vmatprep.subr.mxu0 0.0
    %620 = vmatpush2.msra.mxu0 0.0
    %621 = vmatprep.subr.mxu0 0.0
    %622 = vmatpush2.msra.mxu0 0.0
    %623 = vmatprep.subr.mxu0 0.0
    %624 = vmatpush2.msra.mxu0 0.0
    %625 = vmatprep.subr.mxu0 0.0
    %626 = vmatpush2.msra.mxu0 0.0
    %627 = vmatprep.subr.mxu0 0.0
    %628 = vmatpush2.msra.mxu0 0.0
    %629 = vmatprep.subr.mxu0 0.0
    %630 = vmatpush2.msra.mxu0 0.0
    %631 = vmatprep.mubr.f32.mxu0 0.0
    %632 = vmatmul.mubr.f32.gmra.mxu0 %v565
    %v633 = vpop.f32.mrf.mxu0
    %v634 = vadd.f32 0.0, %v633
    %v635 = vpop.f32.mrf.mxu0
    %636 = vdwg.mxu0
    %v638 = vsel %vm54, %v557, 0
    %640 = vmatprep.subr.mxu0 0.0
    %641 = vmatpush1.msra.mxu0 0.0
    %642 = vmatprep.subr.mxu0 0.0
    %643 = vmatpush1.msra.mxu0 0.0
    %644 = vmatprep.subr.mxu0 0.0
    %645 = vmatpush1.msra.mxu0 0.0
    %646 = vmatprep.subr.mxu0 0.0
    %647 = vmatpush1.msra.mxu0 0.0
    %648 = vmatprep.subr.mxu0 0.0
    %649 = vmatpush1.msra.mxu0 0.0
    %650 = vmatprep.subr.mxu0 0.0
    %651 = vmatpush1.msra.mxu0 0.0
    %652 = vmatprep.subr.mxu0 0.0
    %653 = vmatpush1.msra.mxu0 0.0
    %654 = vmatprep.subr.mxu0 0.0
    %655 = vmatpush1.msra.mxu0 0.0
    %656 = vmatprep.subr.mxu0 0.0
    %657 = vmatpush1.msra.mxu0 0.0
    %658 = vmatprep.subr.mxu0 0.0
    %659 = vmatpush1.msra.mxu0 0.0
    %660 = vmatprep.subr.mxu0 0.0
    %661 = vmatpush1.msra.mxu0 0.0
    %662 = vmatprep.subr.mxu0 0.0
    %663 = vmatpush1.msra.mxu0 0.0
    %664 = vmatprep.subr.mxu0 0.0
    %665 = vmatpush1.msra.mxu0 0.0
    %666 = vmatprep.subr.mxu0 0.0
    %667 = vmatpush1.msra.mxu0 0.0
    %668 = vmatprep.subr.mxu0 0.0
    %669 = vmatpush1.msra.mxu0 0.0
    %670 = vmatprep.subr.mxu0 0.0
    %671 = vmatpush1.msra.mxu0 %v548
    %672 = vmatprep.subr.mxu0 0.0
    %673 = vmatpush2.msra.mxu0 0.0
    %674 = vmatprep.subr.mxu0 0.0
    %675 = vmatpush2.msra.mxu0 0.0
    %676 = vmatprep.subr.mxu0 0.0
    %677 = vmatpush2.msra.mxu0 0.0
    %678 = vmatprep.subr.mxu0 0.0
    %679 = vmatpush2.msra.mxu0 0.0
    %680 = vmatprep.subr.mxu0 0.0
    %681 = vmatpush2.msra.mxu0 0.0
    %682 = vmatprep.subr.mxu0 0.0
    %683 = vmatpush2.msra.mxu0 0.0
    %684 = vmatprep.subr.mxu0 0.0
    %685 = vmatpush2.msra.mxu0 0.0
    %686 = vmatprep.subr.mxu0 0.0
    %687 = vmatpush2.msra.mxu0 0.0
    %688 = vmatprep.subr.mxu0 0.0
    %689 = vmatpush2.msra.mxu0 0.0
    %690 = vmatprep.subr.mxu0 0.0
    %691 = vmatpush2.msra.mxu0 0.0
    %692 = vmatprep.subr.mxu0 0.0
    %693 = vmatpush2.msra.mxu0 0.0
    %694 = vmatprep.subr.mxu0 0.0
    %695 = vmatpush2.msra.mxu0 0.0
    %696 = vmatprep.subr.mxu0 0.0
    %697 = vmatpush2.msra.mxu0 0.0
    %698 = vmatprep.subr.mxu0 0.0
    %699 = vmatpush2.msra.mxu0 0.0
    %700 = vmatprep.subr.mxu0 0.0
    %701 = vmatpush2.msra.mxu0 0.0
    %702 = vmatprep.subr.mxu0 0.0
    %703 = vmatpush2.msra.mxu0 0.0
    %704 = vmatprep.mubr.f32.mxu0 0.0
    %705 = vmatmul.mubr.f32.gmra.mxu0 %v638
    %v706 = vpop.f32.mrf.mxu0
    %v707 = vadd.f32 %v634, %v706
    %v708 = vpop.f32.mrf.mxu0
    %709 = vdwg.mxu0
    %s710 = scalar_lea.vmem %s1, 64
    %v711 = vld [vmem:[%s710] sm:$0xff]
    %v713 = vsel %vm54, %v711, 0
    %715 = vmatprep.subr.mxu0 0.0
    %716 = vmatpush1.msra.mxu0 0.0
    %717 = vmatprep.subr.mxu0 0.0
    %718 = vmatpush1.msra.mxu0 0.0
    %719 = vmatprep.subr.mxu0 0.0
    %720 = vmatpush1.msra.mxu0 0.0
    %721 = vmatprep.subr.mxu0 0.0
    %722 = vmatpush1.msra.mxu0 0.0
    %723 = vmatprep.subr.mxu0 0.0
    %724 = vmatpush1.msra.mxu0 0.0
    %725 = vmatprep.subr.mxu0 0.0
    %726 = vmatpush1.msra.mxu0 0.0
    %727 = vmatprep.subr.mxu0 0.0
    %728 = vmatpush1.msra.mxu0 0.0
    %729 = vmatprep.subr.mxu0 0.0
    %730 = vmatpush1.msra.mxu0 0.0
    %731 = vmatprep.subr.mxu0 0.0
    %732 = vmatpush1.msra.mxu0 0.0
    %733 = vmatprep.subr.mxu0 0.0
    %734 = vmatpush1.msra.mxu0 0.0
    %735 = vmatprep.subr.mxu0 0.0
    %736 = vmatpush1.msra.mxu0 0.0
    %737 = vmatprep.subr.mxu0 0.0
    %738 = vmatpush1.msra.mxu0 0.0
    %739 = vmatprep.subr.mxu0 0.0
    %740 = vmatpush1.msra.mxu0 0.0
    %741 = vmatprep.subr.mxu0 0.0
    %742 = vmatpush1.msra.mxu0 0.0
    %743 = vmatprep.subr.mxu0 0.0
    %744 = vmatpush1.msra.mxu0 0.0
    %745 = vmatprep.subr.mxu0 0.0
    %746 = vmatpush1.msra.mxu0 %v548
    %747 = vmatprep.subr.mxu0 0.0
    %748 = vmatpush2.msra.mxu0 0.0
    %749 = vmatprep.subr.mxu0 0.0
    %750 = vmatpush2.msra.mxu0 0.0
    %751 = vmatprep.subr.mxu0 0.0
    %752 = vmatpush2.msra.mxu0 0.0
    %753 = vmatprep.subr.mxu0 0.0
    %754 = vmatpush2.msra.mxu0 0.0
    %755 = vmatprep.subr.mxu0 0.0
    %756 = vmatpush2.msra.mxu0 0.0
    %757 = vmatprep.subr.mxu0 0.0
    %758 = vmatpush2.msra.mxu0 0.0
    %759 = vmatprep.subr.mxu0 0.0
    %760 = vmatpush2.msra.mxu0 0.0
    %761 = vmatprep.subr.mxu0 0.0
    %762 = vmatpush2.msra.mxu0 0.0
    %763 = vmatprep.subr.mxu0 0.0
    %764 = vmatpush2.msra.mxu0 0.0
    %765 = vmatprep.subr.mxu0 0.0
    %766 = vmatpush2.msra.mxu0 0.0
    %767 = vmatprep.subr.mxu0 0.0
    %768 = vmatpush2.msra.mxu0 0.0
    %769 = vmatprep.subr.mxu0 0.0
    %770 = vmatpush2.msra.mxu0 0.0
    %771 = vmatprep.subr.mxu0 0.0
    %772 = vmatpush2.msra.mxu0 0.0
    %773 = vmatprep.subr.mxu0 0.0
    %774 = vmatpush2.msra.mxu0 0.0
    %775 = vmatprep.subr.mxu0 0.0
    %776 = vmatpush2.msra.mxu0 0.0
    %777 = vmatprep.subr.mxu0 0.0
    %778 = vmatpush2.msra.mxu0 0.0
    %779 = vmatprep.mubr.f32.mxu0 0.0
    %780 = vmatmul.mubr.f32.gmra.mxu0 %v713
    %v781 = vpop.f32.mrf.mxu0
    %v782 = vadd.f32 0.0, %v781
    %v783 = vpop.f32.mrf.mxu0
    %784 = vdwg.mxu0
    %v785 = vadd.f32 %v707, %v782
    %s786 = scalar_lea.vmem %s2, 24
    %v787 = vld [vmem:[%s786] sm:$0xff]
    %789 = vset.pattern.permute.xlu0 0
    %790 = vperm.xlu0 %789, %v787
    %v791 = vpop.permute.xlu0 %790
    %v793 = vmul.f32 %v785, %v791
    %s794 = scalar_lea.vmem %s2, 32
    %v795 = vld [vmem:[%s794] sm:$0xff]
    %797 = vset.pattern.permute.xlu0 0
    %798 = vperm.xlu0 %797, %v795
    %v799 = vpop.permute.xlu0 %798
    %v801 = vadd.f32 %v793, %v799
    %vm802 = vcmp.gt.f32.partialorder %v801, 0.0
    %v803 = vmul.f32 %v801, 0.01
    %v804 = vsel %vm802, %v801, %v803
    %v805 = vmul.f32 %v554, %v44
    %806 = vmatprep.subr.mxu0 0.0
    %807 = vmatpush1.msra.mxu0 0.0
    %808 = vmatprep.subr.mxu0 0.0
    %809 = vmatpush1.msra.mxu0 0.0
    %810 = vmatprep.subr.mxu0 0.0
    %811 = vmatpush1.msra.mxu0 0.0
    %812 = vmatprep.subr.mxu0 0.0
    %813 = vmatpush1.msra.mxu0 0.0
    %814 = vmatprep.subr.mxu0 0.0
    %815 = vmatpush1.msra.mxu0 0.0
    %816 = vmatprep.subr.mxu0 0.0
    %817 = vmatpush1.msra.mxu0 0.0
    %818 = vmatprep.subr.mxu0 0.0
    %819 = vmatpush1.msra.mxu0 0.0
    %820 = vmatprep.subr.mxu0 0.0
    %821 = vmatpush1.msra.mxu0 0.0
    %822 = vmatprep.subr.mxu0 0.0
    %823 = vmatpush1.msra.mxu0 0.0
    %824 = vmatprep.subr.mxu0 0.0
    %825 = vmatpush1.msra.mxu0 0.0
    %826 = vmatprep.subr.mxu0 0.0
    %827 = vmatpush1.msra.mxu0 0.0
    %828 = vmatprep.subr.mxu0 0.0
    %829 = vmatpush1.msra.mxu0 0.0
    %830 = vmatprep.subr.mxu0 0.0
    %831 = vmatpush1.msra.mxu0 0.0
    %832 = vmatprep.subr.mxu0 0.0
    %833 = vmatpush1.msra.mxu0 0.0
    %834 = vmatprep.subr.mxu0 0.0
    %835 = vmatpush1.msra.mxu0 0.0
    %836 = vmatprep.subr.mxu0 0.0
    %837 = vmatpush1.msra.mxu0 %v548
    %838 = vmatprep.subr.mxu0 0.0
    %839 = vmatpush2.msra.mxu0 0.0
    %840 = vmatprep.subr.mxu0 0.0
    %841 = vmatpush2.msra.mxu0 0.0
    %842 = vmatprep.subr.mxu0 0.0
    %843 = vmatpush2.msra.mxu0 0.0
    %844 = vmatprep.subr.mxu0 0.0
    %845 = vmatpush2.msra.mxu0 0.0
    %846 = vmatprep.subr.mxu0 0.0
    %847 = vmatpush2.msra.mxu0 0.0
    %848 = vmatprep.subr.mxu0 0.0
    %849 = vmatpush2.msra.mxu0 0.0
    %850 = vmatprep.subr.mxu0 0.0
    %851 = vmatpush2.msra.mxu0 0.0
    %852 = vmatprep.subr.mxu0 0.0
    %853 = vmatpush2.msra.mxu0 0.0
    %854 = vmatprep.subr.mxu0 0.0
    %855 = vmatpush2.msra.mxu0 0.0
    %856 = vmatprep.subr.mxu0 0.0
    %857 = vmatpush2.msra.mxu0 0.0
    %858 = vmatprep.subr.mxu0 0.0
    %859 = vmatpush2.msra.mxu0 0.0
    %860 = vmatprep.subr.mxu0 0.0
    %861 = vmatpush2.msra.mxu0 0.0
    %862 = vmatprep.subr.mxu0 0.0
    %863 = vmatpush2.msra.mxu0 0.0
    %864 = vmatprep.subr.mxu0 0.0
    %865 = vmatpush2.msra.mxu0 0.0
    %866 = vmatprep.subr.mxu0 0.0
    %867 = vmatpush2.msra.mxu0 0.0
    %868 = vmatprep.subr.mxu0 0.0
    %869 = vmatpush2.msra.mxu0 0.0
    %870 = vmatprep.mubr.f32.mxu0 0.0
    %871 = vmatmul.mubr.f32.gmra.mxu0 %v565
    %v872 = vpop.f32.mrf.mxu0
    %v873 = vadd.f32 0.0, %v872
    %v874 = vpop.f32.mrf.mxu0
    %875 = vdwg.mxu0
    %876 = vmatprep.subr.mxu0 0.0
    %877 = vmatpush1.msra.mxu0 0.0
    %878 = vmatprep.subr.mxu0 0.0
    %879 = vmatpush1.msra.mxu0 0.0
    %880 = vmatprep.subr.mxu0 0.0
    %881 = vmatpush1.msra.mxu0 0.0
    %882 = vmatprep.subr.mxu0 0.0
    %883 = vmatpush1.msra.mxu0 0.0
    %884 = vmatprep.subr.mxu0 0.0
    %885 = vmatpush1.msra.mxu0 0.0
    %886 = vmatprep.subr.mxu0 0.0
    %887 = vmatpush1.msra.mxu0 0.0
    %888 = vmatprep.subr.mxu0 0.0
    %889 = vmatpush1.msra.mxu0 0.0
    %890 = vmatprep.subr.mxu0 0.0
    %891 = vmatpush1.msra.mxu0 0.0
    %892 = vmatprep.subr.mxu0 0.0
    %893 = vmatpush1.msra.mxu0 0.0
    %894 = vmatprep.subr.mxu0 0.0
    %895 = vmatpush1.msra.mxu0 0.0
    %896 = vmatprep.subr.mxu0 0.0
    %897 = vmatpush1.msra.mxu0 0.0
    %898 = vmatprep.subr.mxu0 0.0
    %899 = vmatpush1.msra.mxu0 0.0
    %900 = vmatprep.subr.mxu0 0.0
    %901 = vmatpush1.msra.mxu0 0.0
    %902 = vmatprep.subr.mxu0 0.0
    %903 = vmatpush1.msra.mxu0 0.0
    %904 = vmatprep.subr.mxu0 0.0
    %905 = vmatpush1.msra.mxu0 0.0
    %906 = vmatprep.subr.mxu0 0.0
    %907 = vmatpush1.msra.mxu0 %v548
    %908 = vmatprep.subr.mxu0 0.0
    %909 = vmatpush2.msra.mxu0 0.0
    %910 = vmatprep.subr.mxu0 0.0
    %911 = vmatpush2.msra.mxu0 0.0
    %912 = vmatprep.subr.mxu0 0.0
    %913 = vmatpush2.msra.mxu0 0.0
    %914 = vmatprep.subr.mxu0 0.0
    %915 = vmatpush2.msra.mxu0 0.0
    %916 = vmatprep.subr.mxu0 0.0
    %917 = vmatpush2.msra.mxu0 0.0
    %918 = vmatprep.subr.mxu0 0.0
    %919 = vmatpush2.msra.mxu0 0.0
    %920 = vmatprep.subr.mxu0 0.0
    %921 = vmatpush2.msra.mxu0 0.0
    %922 = vmatprep.subr.mxu0 0.0
    %923 = vmatpush2.msra.mxu0 0.0
    %924 = vmatprep.subr.mxu0 0.0
    %925 = vmatpush2.msra.mxu0 0.0
    %926 = vmatprep.subr.mxu0 0.0
    %927 = vmatpush2.msra.mxu0 0.0
    %928 = vmatprep.subr.mxu0 0.0
    %929 = vmatpush2.msra.mxu0 0.0
    %930 = vmatprep.subr.mxu0 0.0
    %931 = vmatpush2.msra.mxu0 0.0
    %932 = vmatprep.subr.mxu0 0.0
    %933 = vmatpush2.msra.mxu0 0.0
    %934 = vmatprep.subr.mxu0 0.0
    %935 = vmatpush2.msra.mxu0 0.0
    %936 = vmatprep.subr.mxu0 0.0
    %937 = vmatpush2.msra.mxu0 0.0
    %938 = vmatprep.subr.mxu0 0.0
    %939 = vmatpush2.msra.mxu0 0.0
    %940 = vmatprep.mubr.f32.mxu0 0.0
    %941 = vmatmul.mubr.f32.gmra.mxu0 %v638
    %v942 = vpop.f32.mrf.mxu0
    %v943 = vadd.f32 %v873, %v942
    %v944 = vpop.f32.mrf.mxu0
    %945 = vdwg.mxu0
    %947 = vrot.lane.b32.xlu0 %v805, 127
    %v948 = vpop.permute.xlu0 %947
    %950 = vmatprep.subr.mxu0 0.0
    %951 = vmatpush1.msra.mxu0 0.0
    %952 = vmatprep.subr.mxu0 0.0
    %953 = vmatpush1.msra.mxu0 0.0
    %954 = vmatprep.subr.mxu0 0.0
    %955 = vmatpush1.msra.mxu0 0.0
    %956 = vmatprep.subr.mxu0 0.0
    %957 = vmatpush1.msra.mxu0 0.0
    %958 = vmatprep.subr.mxu0 0.0
    %959 = vmatpush1.msra.mxu0 0.0
    %960 = vmatprep.subr.mxu0 0.0
    %961 = vmatpush1.msra.mxu0 0.0
    %962 = vmatprep.subr.mxu0 0.0
    %963 = vmatpush1.msra.mxu0 0.0
    %964 = vmatprep.subr.mxu0 0.0
    %965 = vmatpush1.msra.mxu0 0.0
    %966 = vmatprep.subr.mxu0 0.0
    %967 = vmatpush1.msra.mxu0 0.0
    %968 = vmatprep.subr.mxu0 0.0
    %969 = vmatpush1.msra.mxu0 0.0
    %970 = vmatprep.subr.mxu0 0.0
    %971 = vmatpush1.msra.mxu0 0.0
    %972 = vmatprep.subr.mxu0 0.0
    %973 = vmatpush1.msra.mxu0 0.0
    %974 = vmatprep.subr.mxu0 0.0
    %975 = vmatpush1.msra.mxu0 0.0
    %976 = vmatprep.subr.mxu0 0.0
    %977 = vmatpush1.msra.mxu0 0.0
    %978 = vmatprep.subr.mxu0 0.0
    %979 = vmatpush1.msra.mxu0 0.0
    %980 = vmatprep.subr.mxu0 0.0
    %981 = vmatpush1.msra.mxu0 %v948
    %982 = vmatprep.subr.mxu0 0.0
    %983 = vmatpush2.msra.mxu0 0.0
    %984 = vmatprep.subr.mxu0 0.0
    %985 = vmatpush2.msra.mxu0 0.0
    %986 = vmatprep.subr.mxu0 0.0
    %987 = vmatpush2.msra.mxu0 0.0
    %988 = vmatprep.subr.mxu0 0.0
    %989 = vmatpush2.msra.mxu0 0.0
    %990 = vmatprep.subr.mxu0 0.0
    %991 = vmatpush2.msra.mxu0 0.0
    %992 = vmatprep.subr.mxu0 0.0
    %993 = vmatpush2.msra.mxu0 0.0
    %994 = vmatprep.subr.mxu0 0.0
    %995 = vmatpush2.msra.mxu0 0.0
    %996 = vmatprep.subr.mxu0 0.0
    %997 = vmatpush2.msra.mxu0 0.0
    %998 = vmatprep.subr.mxu0 0.0
    %999 = vmatpush2.msra.mxu0 0.0
    %1000 = vmatprep.subr.mxu0 0.0
    %1001 = vmatpush2.msra.mxu0 0.0
    %1002 = vmatprep.subr.mxu0 0.0
    %1003 = vmatpush2.msra.mxu0 0.0
    %1004 = vmatprep.subr.mxu0 0.0
    %1005 = vmatpush2.msra.mxu0 0.0
    %1006 = vmatprep.subr.mxu0 0.0
    %1007 = vmatpush2.msra.mxu0 0.0
    %1008 = vmatprep.subr.mxu0 0.0
    %1009 = vmatpush2.msra.mxu0 0.0
    %1010 = vmatprep.subr.mxu0 0.0
    %1011 = vmatpush2.msra.mxu0 0.0
    %1012 = vmatprep.subr.mxu0 0.0
    %1013 = vmatpush2.msra.mxu0 0.0
    %1014 = vmatprep.mubr.f32.mxu0 0.0
    %1015 = vmatmul.mubr.f32.gmra.mxu0 %v713
    %v1016 = vpop.f32.mrf.mxu0
    %v1017 = vadd.f32 0.0, %v1016
    %v1018 = vpop.f32.mrf.mxu0
    %1019 = vdwg.mxu0
    %v1020 = vadd.f32 %v943, %v1017
    %v1021 = vmul.f32 %v1020, %v791
    %v1022 = vadd.f32 %v1021, %v799
    %vm1023 = vcmp.gt.f32.partialorder %v1022, 0.0
    %v1024 = vmul.f32 %v1022, 0.01
    %v1025 = vsel %vm1023, %v1022, %v1024
    %v1026 = vadd.f32 %v15, %v548
    %1027 = vrot.lane.b32.xlu0 %v1025, 32
    %v1028 = vpop.permute.xlu0 %1027
    %v1029 = vsel %vm30, %v1028, %v1025
    %1030 = vrot.lane.b32.xlu0 %v1029, 32
    %v1031 = vpop.permute.xlu0 %1030
    %v1032 = vsel %vm30, %v1031, %v1025
    %v1033 = vmul.f32 %v1032, %v39
    %s1034 = scalar_lea.vmem %s1, 80
    %v1035 = vld [vmem:[%s1034] sm:$0xff]
    %s1036 = scalar_lea.vmem %s1, 72
    %v1037 = vld [vmem:[%s1036] sm:$0xff]
    %1039 = vrot.lane.b32.xlu0 %v1033, 97
    %v1040 = vpop.permute.xlu0 %1039
    %v1043 = vsel %vm54, %v1037, 0
    %1045 = vmatprep.subr.mxu0 0.0
    %1046 = vmatpush1.msra.mxu0 0.0
    %1047 = vmatprep.subr.mxu0 0.0
    %1048 = vmatpush1.msra.mxu0 0.0
    %1049 = vmatprep.subr.mxu0 0.0
    %1050 = vmatpush1.msra.mxu0 0.0
    %1051 = vmatprep.subr.mxu0 0.0
    %1052 = vmatpush1.msra.mxu0 0.0
    %1053 = vmatprep.subr.mxu0 0.0
    %1054 = vmatpush1.msra.mxu0 0.0
    %1055 = vmatprep.subr.mxu0 0.0
    %1056 = vmatpush1.msra.mxu0 0.0
    %1057 = vmatprep.subr.mxu0 0.0
    %1058 = vmatpush1.msra.mxu0 0.0
    %1059 = vmatprep.subr.mxu0 0.0
    %1060 = vmatpush1.msra.mxu0 0.0
    %1061 = vmatprep.subr.mxu0 0.0
    %1062 = vmatpush1.msra.mxu0 0.0
    %1063 = vmatprep.subr.mxu0 0.0
    %1064 = vmatpush1.msra.mxu0 0.0
    %1065 = vmatprep.subr.mxu0 0.0
    %1066 = vmatpush1.msra.mxu0 0.0
    %1067 = vmatprep.subr.mxu0 0.0
    %1068 = vmatpush1.msra.mxu0 0.0
    %1069 = vmatprep.subr.mxu0 0.0
    %1070 = vmatpush1.msra.mxu0 0.0
    %1071 = vmatprep.subr.mxu0 0.0
    %1072 = vmatpush1.msra.mxu0 0.0
    %1073 = vmatprep.subr.mxu0 0.0
    %1074 = vmatpush1.msra.mxu0 0.0
    %1075 = vmatprep.subr.mxu0 0.0
    %1076 = vmatpush1.msra.mxu0 %v1040
    %1077 = vmatprep.subr.mxu0 0.0
    %1078 = vmatpush2.msra.mxu0 0.0
    %1079 = vmatprep.subr.mxu0 0.0
    %1080 = vmatpush2.msra.mxu0 0.0
    %1081 = vmatprep.subr.mxu0 0.0
    %1082 = vmatpush2.msra.mxu0 0.0
    %1083 = vmatprep.subr.mxu0 0.0
    %1084 = vmatpush2.msra.mxu0 0.0
    %1085 = vmatprep.subr.mxu0 0.0
    %1086 = vmatpush2.msra.mxu0 0.0
    %1087 = vmatprep.subr.mxu0 0.0
    %1088 = vmatpush2.msra.mxu0 0.0
    %1089 = vmatprep.subr.mxu0 0.0
    %1090 = vmatpush2.msra.mxu0 0.0
    %1091 = vmatprep.subr.mxu0 0.0
    %1092 = vmatpush2.msra.mxu0 0.0
    %1093 = vmatprep.subr.mxu0 0.0
    %1094 = vmatpush2.msra.mxu0 0.0
    %1095 = vmatprep.subr.mxu0 0.0
    %1096 = vmatpush2.msra.mxu0 0.0
    %1097 = vmatprep.subr.mxu0 0.0
    %1098 = vmatpush2.msra.mxu0 0.0
    %1099 = vmatprep.subr.mxu0 0.0
    %1100 = vmatpush2.msra.mxu0 0.0
    %1101 = vmatprep.subr.mxu0 0.0
    %1102 = vmatpush2.msra.mxu0 0.0
    %1103 = vmatprep.subr.mxu0 0.0
    %1104 = vmatpush2.msra.mxu0 0.0
    %1105 = vmatprep.subr.mxu0 0.0
    %1106 = vmatpush2.msra.mxu0 0.0
    %1107 = vmatprep.subr.mxu0 0.0
    %1108 = vmatpush2.msra.mxu0 0.0
    %1109 = vmatprep.mubr.f32.mxu0 0.0
    %1110 = vmatmul.mubr.f32.gmra.mxu0 %v1043
    %v1111 = vpop.f32.mrf.mxu0
    %v1112 = vadd.f32 0.0, %v1111
    %v1113 = vpop.f32.mrf.mxu0
    %1114 = vdwg.mxu0
    %v1116 = vsel %vm54, %v1035, 0
    %1118 = vmatprep.subr.mxu0 0.0
    %1119 = vmatpush1.msra.mxu0 0.0
    %1120 = vmatprep.subr.mxu0 0.0
    %1121 = vmatpush1.msra.mxu0 0.0
    %1122 = vmatprep.subr.mxu0 0.0
    %1123 = vmatpush1.msra.mxu0 0.0
    %1124 = vmatprep.subr.mxu0 0.0
    %1125 = vmatpush1.msra.mxu0 0.0
    %1126 = vmatprep.subr.mxu0 0.0
    %1127 = vmatpush1.msra.mxu0 0.0
    %1128 = vmatprep.subr.mxu0 0.0
    %1129 = vmatpush1.msra.mxu0 0.0
    %1130 = vmatprep.subr.mxu0 0.0
    %1131 = vmatpush1.msra.mxu0 0.0
    %1132 = vmatprep.subr.mxu0 0.0
    %1133 = vmatpush1.msra.mxu0 0.0
    %1134 = vmatprep.subr.mxu0 0.0
    %1135 = vmatpush1.msra.mxu0 0.0
    %1136 = vmatprep.subr.mxu0 0.0
    %1137 = vmatpush1.msra.mxu0 0.0
    %1138 = vmatprep.subr.mxu0 0.0
    %1139 = vmatpush1.msra.mxu0 0.0
    %1140 = vmatprep.subr.mxu0 0.0
    %1141 = vmatpush1.msra.mxu0 0.0
    %1142 = vmatprep.subr.mxu0 0.0
    %1143 = vmatpush1.msra.mxu0 0.0
    %1144 = vmatprep.subr.mxu0 0.0
    %1145 = vmatpush1.msra.mxu0 0.0
    %1146 = vmatprep.subr.mxu0 0.0
    %1147 = vmatpush1.msra.mxu0 0.0
    %1148 = vmatprep.subr.mxu0 0.0
    %1149 = vmatpush1.msra.mxu0 %v804
    %1150 = vmatprep.subr.mxu0 0.0
    %1151 = vmatpush2.msra.mxu0 0.0
    %1152 = vmatprep.subr.mxu0 0.0
    %1153 = vmatpush2.msra.mxu0 0.0
    %1154 = vmatprep.subr.mxu0 0.0
    %1155 = vmatpush2.msra.mxu0 0.0
    %1156 = vmatprep.subr.mxu0 0.0
    %1157 = vmatpush2.msra.mxu0 0.0
    %1158 = vmatprep.subr.mxu0 0.0
    %1159 = vmatpush2.msra.mxu0 0.0
    %1160 = vmatprep.subr.mxu0 0.0
    %1161 = vmatpush2.msra.mxu0 0.0
    %1162 = vmatprep.subr.mxu0 0.0
    %1163 = vmatpush2.msra.mxu0 0.0
    %1164 = vmatprep.subr.mxu0 0.0
    %1165 = vmatpush2.msra.mxu0 0.0
    %1166 = vmatprep.subr.mxu0 0.0
    %1167 = vmatpush2.msra.mxu0 0.0
    %1168 = vmatprep.subr.mxu0 0.0
    %1169 = vmatpush2.msra.mxu0 0.0
    %1170 = vmatprep.subr.mxu0 0.0
    %1171 = vmatpush2.msra.mxu0 0.0
    %1172 = vmatprep.subr.mxu0 0.0
    %1173 = vmatpush2.msra.mxu0 0.0
    %1174 = vmatprep.subr.mxu0 0.0
    %1175 = vmatpush2.msra.mxu0 0.0
    %1176 = vmatprep.subr.mxu0 0.0
    %1177 = vmatpush2.msra.mxu0 0.0
    %1178 = vmatprep.subr.mxu0 0.0
    %1179 = vmatpush2.msra.mxu0 0.0
    %1180 = vmatprep.subr.mxu0 0.0
    %1181 = vmatpush2.msra.mxu0 0.0
    %1182 = vmatprep.mubr.f32.mxu0 0.0
    %1183 = vmatmul.mubr.f32.gmra.mxu0 %v1116
    %v1184 = vpop.f32.mrf.mxu0
    %v1185 = vadd.f32 %v1112, %v1184
    %v1186 = vpop.f32.mrf.mxu0
    %1187 = vdwg.mxu0
    %s1188 = scalar_lea.vmem %s1, 88
    %v1189 = vld [vmem:[%s1188] sm:$0xff]
    %v1191 = vsel %vm54, %v1189, 0
    %1193 = vmatprep.subr.mxu0 0.0
    %1194 = vmatpush1.msra.mxu0 0.0
    %1195 = vmatprep.subr.mxu0 0.0
    %1196 = vmatpush1.msra.mxu0 0.0
    %1197 = vmatprep.subr.mxu0 0.0
    %1198 = vmatpush1.msra.mxu0 0.0
    %1199 = vmatprep.subr.mxu0 0.0
    %1200 = vmatpush1.msra.mxu0 0.0
    %1201 = vmatprep.subr.mxu0 0.0
    %1202 = vmatpush1.msra.mxu0 0.0
    %1203 = vmatprep.subr.mxu0 0.0
    %1204 = vmatpush1.msra.mxu0 0.0
    %1205 = vmatprep.subr.mxu0 0.0
    %1206 = vmatpush1.msra.mxu0 0.0
    %1207 = vmatprep.subr.mxu0 0.0
    %1208 = vmatpush1.msra.mxu0 0.0
    %1209 = vmatprep.subr.mxu0 0.0
    %1210 = vmatpush1.msra.mxu0 0.0
    %1211 = vmatprep.subr.mxu0 0.0
    %1212 = vmatpush1.msra.mxu0 0.0
    %1213 = vmatprep.subr.mxu0 0.0
    %1214 = vmatpush1.msra.mxu0 0.0
    %1215 = vmatprep.subr.mxu0 0.0
    %1216 = vmatpush1.msra.mxu0 0.0
    %1217 = vmatprep.subr.mxu0 0.0
    %1218 = vmatpush1.msra.mxu0 0.0
    %1219 = vmatprep.subr.mxu0 0.0
    %1220 = vmatpush1.msra.mxu0 0.0
    %1221 = vmatprep.subr.mxu0 0.0
    %1222 = vmatpush1.msra.mxu0 0.0
    %1223 = vmatprep.subr.mxu0 0.0
    %1224 = vmatpush1.msra.mxu0 %v1025
    %1225 = vmatprep.subr.mxu0 0.0
    %1226 = vmatpush2.msra.mxu0 0.0
    %1227 = vmatprep.subr.mxu0 0.0
    %1228 = vmatpush2.msra.mxu0 0.0
    %1229 = vmatprep.subr.mxu0 0.0
    %1230 = vmatpush2.msra.mxu0 0.0
    %1231 = vmatprep.subr.mxu0 0.0
    %1232 = vmatpush2.msra.mxu0 0.0
    %1233 = vmatprep.subr.mxu0 0.0
    %1234 = vmatpush2.msra.mxu0 0.0
    %1235 = vmatprep.subr.mxu0 0.0
    %1236 = vmatpush2.msra.mxu0 0.0
    %1237 = vmatprep.subr.mxu0 0.0
    %1238 = vmatpush2.msra.mxu0 0.0
    %1239 = vmatprep.subr.mxu0 0.0
    %1240 = vmatpush2.msra.mxu0 0.0
    %1241 = vmatprep.subr.mxu0 0.0
    %1242 = vmatpush2.msra.mxu0 0.0
    %1243 = vmatprep.subr.mxu0 0.0
    %1244 = vmatpush2.msra.mxu0 0.0
    %1245 = vmatprep.subr.mxu0 0.0
    %1246 = vmatpush2.msra.mxu0 0.0
    %1247 = vmatprep.subr.mxu0 0.0
    %1248 = vmatpush2.msra.mxu0 0.0
    %1249 = vmatprep.subr.mxu0 0.0
    %1250 = vmatpush2.msra.mxu0 0.0
    %1251 = vmatprep.subr.mxu0 0.0
    %1252 = vmatpush2.msra.mxu0 0.0
    %1253 = vmatprep.subr.mxu0 0.0
    %1254 = vmatpush2.msra.mxu0 0.0
    %1255 = vmatprep.subr.mxu0 0.0
    %1256 = vmatpush2.msra.mxu0 0.0
    %1257 = vmatprep.mubr.f32.mxu0 0.0
    %1258 = vmatmul.mubr.f32.gmra.mxu0 %v1191
    %v1259 = vpop.f32.mrf.mxu0
    %v1260 = vadd.f32 0.0, %v1259
    %v1261 = vpop.f32.mrf.mxu0
    %1262 = vdwg.mxu0
    %v1263 = vadd.f32 %v1185, %v1260
    %s1264 = scalar_lea.vmem %s2, 40
    %v1265 = vld [vmem:[%s1264] sm:$0xff]
    %1267 = vset.pattern.permute.xlu0 0
    %1268 = vperm.xlu0 %1267, %v1265
    %v1269 = vpop.permute.xlu0 %1268
    %v1271 = vadd.f32 %v1263, %v1269
    %v1272 = vadd.f32 %v1026, %v1271
    %vm1273 = vcmask 261120
    %1274 = vst.msk [vmem:[#allocation2] sm:$0xff] %vm1273, %v1272
    %1275 = vrot.lane.b32.xlu0 %v804, 32
    %v1276 = vpop.permute.xlu0 %1275
    %v1277 = vsel %vm30, %v1276, %v804
    %1278 = vrot.lane.b32.xlu0 %v1277, 32
    %v1279 = vpop.permute.xlu0 %1278
    %v1280 = vsel %vm30, %v1279, %v804
    %v1281 = vmul.f32 %v1280, %v44
    %v1282 = vld [vmem:[%s1034] sm:$0xff]
    %v1283 = vld [vmem:[%s1036] sm:$0xff]
    %v1285 = vsel %vm54, %v1283, 0
    %1287 = vmatprep.subr.mxu0 0.0
    %1288 = vmatpush1.msra.mxu0 0.0
    %1289 = vmatprep.subr.mxu0 0.0
    %1290 = vmatpush1.msra.mxu0 0.0
    %1291 = vmatprep.subr.mxu0 0.0
    %1292 = vmatpush1.msra.mxu0 0.0
    %1293 = vmatprep.subr.mxu0 0.0
    %1294 = vmatpush1.msra.mxu0 0.0
    %1295 = vmatprep.subr.mxu0 0.0
    %1296 = vmatpush1.msra.mxu0 0.0
    %1297 = vmatprep.subr.mxu0 0.0
    %1298 = vmatpush1.msra.mxu0 0.0
    %1299 = vmatprep.subr.mxu0 0.0
    %1300 = vmatpush1.msra.mxu0 0.0
    %1301 = vmatprep.subr.mxu0 0.0
    %1302 = vmatpush1.msra.mxu0 0.0
    %1303 = vmatprep.subr.mxu0 0.0
    %1304 = vmatpush1.msra.mxu0 0.0
    %1305 = vmatprep.subr.mxu0 0.0
    %1306 = vmatpush1.msra.mxu0 0.0
    %1307 = vmatprep.subr.mxu0 0.0
    %1308 = vmatpush1.msra.mxu0 0.0
    %1309 = vmatprep.subr.mxu0 0.0
    %1310 = vmatpush1.msra.mxu0 0.0
    %1311 = vmatprep.subr.mxu0 0.0
    %1312 = vmatpush1.msra.mxu0 0.0
    %1313 = vmatprep.subr.mxu0 0.0
    %1314 = vmatpush1.msra.mxu0 0.0
    %1315 = vmatprep.subr.mxu0 0.0
    %1316 = vmatpush1.msra.mxu0 0.0
    %1317 = vmatprep.subr.mxu0 0.0
    %1318 = vmatpush1.msra.mxu0 %v804
    %1319 = vmatprep.subr.mxu0 0.0
    %1320 = vmatpush2.msra.mxu0 0.0
    %1321 = vmatprep.subr.mxu0 0.0
    %1322 = vmatpush2.msra.mxu0 0.0
    %1323 = vmatprep.subr.mxu0 0.0
    %1324 = vmatpush2.msra.mxu0 0.0
    %1325 = vmatprep.subr.mxu0 0.0
    %1326 = vmatpush2.msra.mxu0 0.0
    %1327 = vmatprep.subr.mxu0 0.0
    %1328 = vmatpush2.msra.mxu0 0.0
    %1329 = vmatprep.subr.mxu0 0.0
    %1330 = vmatpush2.msra.mxu0 0.0
    %1331 = vmatprep.subr.mxu0 0.0
    %1332 = vmatpush2.msra.mxu0 0.0
    %1333 = vmatprep.subr.mxu0 0.0
    %1334 = vmatpush2.msra.mxu0 0.0
    %1335 = vmatprep.subr.mxu0 0.0
    %1336 = vmatpush2.msra.mxu0 0.0
    %1337 = vmatprep.subr.mxu0 0.0
    %1338 = vmatpush2.msra.mxu0 0.0
    %1339 = vmatprep.subr.mxu0 0.0
    %1340 = vmatpush2.msra.mxu0 0.0
    %1341 = vmatprep.subr.mxu0 0.0
    %1342 = vmatpush2.msra.mxu0 0.0
    %1343 = vmatprep.subr.mxu0 0.0
    %1344 = vmatpush2.msra.mxu0 0.0
    %1345 = vmatprep.subr.mxu0 0.0
    %1346 = vmatpush2.msra.mxu0 0.0
    %1347 = vmatprep.subr.mxu0 0.0
    %1348 = vmatpush2.msra.mxu0 0.0
    %1349 = vmatprep.subr.mxu0 0.0
    %1350 = vmatpush2.msra.mxu0 0.0
    %1351 = vmatprep.mubr.f32.mxu0 0.0
    %1352 = vmatmul.mubr.f32.gmra.mxu0 %v1285
    %v1353 = vpop.f32.mrf.mxu0
    %v1354 = vadd.f32 0.0, %v1353
    %v1355 = vpop.f32.mrf.mxu0
    %1356 = vdwg.mxu0
    %v1358 = vsel %vm54, %v1282, 0
    %1360 = vmatprep.subr.mxu0 0.0
    %1361 = vmatpush1.msra.mxu0 0.0
    %1362 = vmatprep.subr.mxu0 0.0
    %1363 = vmatpush1.msra.mxu0 0.0
    %1364 = vmatprep.subr.mxu0 0.0
    %1365 = vmatpush1.msra.mxu0 0.0
    %1366 = vmatprep.subr.mxu0 0.0
    %1367 = vmatpush1.msra.mxu0 0.0
    %1368 = vmatprep.subr.mxu0 0.0
    %1369 = vmatpush1.msra.mxu0 0.0
    %1370 = vmatprep.subr.mxu0 0.0
    %1371 = vmatpush1.msra.mxu0 0.0
    %1372 = vmatprep.subr.mxu0 0.0
    %1373 = vmatpush1.msra.mxu0 0.0
    %1374 = vmatprep.subr.mxu0 0.0
    %1375 = vmatpush1.msra.mxu0 0.0
    %1376 = vmatprep.subr.mxu0 0.0
    %1377 = vmatpush1.msra.mxu0 0.0
    %1378 = vmatprep.subr.mxu0 0.0
    %1379 = vmatpush1.msra.mxu0 0.0
    %1380 = vmatprep.subr.mxu0 0.0
    %1381 = vmatpush1.msra.mxu0 0.0
    %1382 = vmatprep.subr.mxu0 0.0
    %1383 = vmatpush1.msra.mxu0 0.0
    %1384 = vmatprep.subr.mxu0 0.0
    %1385 = vmatpush1.msra.mxu0 0.0
    %1386 = vmatprep.subr.mxu0 0.0
    %1387 = vmatpush1.msra.mxu0 0.0
    %1388 = vmatprep.subr.mxu0 0.0
    %1389 = vmatpush1.msra.mxu0 0.0
    %1390 = vmatprep.subr.mxu0 0.0
    %1391 = vmatpush1.msra.mxu0 %v1025
    %1392 = vmatprep.subr.mxu0 0.0
    %1393 = vmatpush2.msra.mxu0 0.0
    %1394 = vmatprep.subr.mxu0 0.0
    %1395 = vmatpush2.msra.mxu0 0.0
    %1396 = vmatprep.subr.mxu0 0.0
    %1397 = vmatpush2.msra.mxu0 0.0
    %1398 = vmatprep.subr.mxu0 0.0
    %1399 = vmatpush2.msra.mxu0 0.0
    %1400 = vmatprep.subr.mxu0 0.0
    %1401 = vmatpush2.msra.mxu0 0.0
    %1402 = vmatprep.subr.mxu0 0.0
    %1403 = vmatpush2.msra.mxu0 0.0
    %1404 = vmatprep.subr.mxu0 0.0
    %1405 = vmatpush2.msra.mxu0 0.0
    %1406 = vmatprep.subr.mxu0 0.0
    %1407 = vmatpush2.msra.mxu0 0.0
    %1408 = vmatprep.subr.mxu0 0.0
    %1409 = vmatpush2.msra.mxu0 0.0
    %1410 = vmatprep.subr.mxu0 0.0
    %1411 = vmatpush2.msra.mxu0 0.0
    %1412 = vmatprep.subr.mxu0 0.0
    %1413 = vmatpush2.msra.mxu0 0.0
    %1414 = vmatprep.subr.mxu0 0.0
    %1415 = vmatpush2.msra.mxu0 0.0
    %1416 = vmatprep.subr.mxu0 0.0
    %1417 = vmatpush2.msra.mxu0 0.0
    %1418 = vmatprep.subr.mxu0 0.0
    %1419 = vmatpush2.msra.mxu0 0.0
    %1420 = vmatprep.subr.mxu0 0.0
    %1421 = vmatpush2.msra.mxu0 0.0
    %1422 = vmatprep.subr.mxu0 0.0
    %1423 = vmatpush2.msra.mxu0 0.0
    %1424 = vmatprep.mubr.f32.mxu0 0.0
    %1425 = vmatmul.mubr.f32.gmra.mxu0 %v1358
    %v1426 = vpop.f32.mrf.mxu0
    %v1427 = vadd.f32 %v1354, %v1426
    %v1428 = vpop.f32.mrf.mxu0
    %1429 = vdwg.mxu0
    %v1430 = vld [vmem:[%s1188] sm:$0xff]
    %1432 = vrot.lane.b32.xlu0 %v1281, 127
    %v1433 = vpop.permute.xlu0 %1432
    %v1436 = vsel %vm54, %v1430, 0
    %1438 = vmatprep.subr.mxu0 0.0
    %1439 = vmatpush1.msra.mxu0 0.0
    %1440 = vmatprep.subr.mxu0 0.0
    %1441 = vmatpush1.msra.mxu0 0.0
    %1442 = vmatprep.subr.mxu0 0.0
    %1443 = vmatpush1.msra.mxu0 0.0
    %1444 = vmatprep.subr.mxu0 0.0
    %1445 = vmatpush1.msra.mxu0 0.0
    %1446 = vmatprep.subr.mxu0 0.0
    %1447 = vmatpush1.msra.mxu0 0.0
    %1448 = vmatprep.subr.mxu0 0.0
    %1449 = vmatpush1.msra.mxu0 0.0
    %1450 = vmatprep.subr.mxu0 0.0
    %1451 = vmatpush1.msra.mxu0 0.0
    %1452 = vmatprep.subr.mxu0 0.0
    %1453 = vmatpush1.msra.mxu0 0.0
    %1454 = vmatprep.subr.mxu0 0.0
    %1455 = vmatpush1.msra.mxu0 0.0
    %1456 = vmatprep.subr.mxu0 0.0
    %1457 = vmatpush1.msra.mxu0 0.0
    %1458 = vmatprep.subr.mxu0 0.0
    %1459 = vmatpush1.msra.mxu0 0.0
    %1460 = vmatprep.subr.mxu0 0.0
    %1461 = vmatpush1.msra.mxu0 0.0
    %1462 = vmatprep.subr.mxu0 0.0
    %1463 = vmatpush1.msra.mxu0 0.0
    %1464 = vmatprep.subr.mxu0 0.0
    %1465 = vmatpush1.msra.mxu0 0.0
    %1466 = vmatprep.subr.mxu0 0.0
    %1467 = vmatpush1.msra.mxu0 0.0
    %1468 = vmatprep.subr.mxu0 0.0
    %1469 = vmatpush1.msra.mxu0 %v1433
    %1470 = vmatprep.subr.mxu0 0.0
    %1471 = vmatpush2.msra.mxu0 0.0
    %1472 = vmatprep.subr.mxu0 0.0
    %1473 = vmatpush2.msra.mxu0 0.0
    %1474 = vmatprep.subr.mxu0 0.0
    %1475 = vmatpush2.msra.mxu0 0.0
    %1476 = vmatprep.subr.mxu0 0.0
    %1477 = vmatpush2.msra.mxu0 0.0
    %1478 = vmatprep.subr.mxu0 0.0
    %1479 = vmatpush2.msra.mxu0 0.0
    %1480 = vmatprep.subr.mxu0 0.0
    %1481 = vmatpush2.msra.mxu0 0.0
    %1482 = vmatprep.subr.mxu0 0.0
    %1483 = vmatpush2.msra.mxu0 0.0
    %1484 = vmatprep.subr.mxu0 0.0
    %1485 = vmatpush2.msra.mxu0 0.0
    %1486 = vmatprep.subr.mxu0 0.0
    %1487 = vmatpush2.msra.mxu0 0.0
    %1488 = vmatprep.subr.mxu0 0.0
    %1489 = vmatpush2.msra.mxu0 0.0
    %1490 = vmatprep.subr.mxu0 0.0
    %1491 = vmatpush2.msra.mxu0 0.0
    %1492 = vmatprep.subr.mxu0 0.0
    %1493 = vmatpush2.msra.mxu0 0.0
    %1494 = vmatprep.subr.mxu0 0.0
    %1495 = vmatpush2.msra.mxu0 0.0
    %1496 = vmatprep.subr.mxu0 0.0
    %1497 = vmatpush2.msra.mxu0 0.0
    %1498 = vmatprep.subr.mxu0 0.0
    %1499 = vmatpush2.msra.mxu0 0.0
    %1500 = vmatprep.subr.mxu0 0.0
    %1501 = vmatpush2.msra.mxu0 0.0
    %1502 = vmatprep.mubr.f32.mxu0 0.0
    %1503 = vmatmul.mubr.f32.gmra.mxu0 %v1436
    %v1504 = vpop.f32.mrf.mxu0
    %v1505 = vadd.f32 0.0, %v1504
    %v1506 = vpop.f32.mrf.mxu0
    %1507 = vdwg.mxu0
    %v1508 = vadd.f32 %v1427, %v1505
    %v1509 = vld [vmem:[%s1264] sm:$0xff]
    %1511 = vset.pattern.permute.xlu0 0
    %1512 = vperm.xlu0 %1511, %v1509
    %v1513 = vpop.permute.xlu0 %1512
    %v1515 = vadd.f32 %v1508, %v1513
    %v1516 = vadd.f32 %v1026, %v1515
    %s1517 = scalar_lea.vmem [#allocation2], 8
    %1518 = vst.msk [vmem:[%s1517] sm:$0xff] %vm1273, %v1516
    // Predicated region
    $region14: #{tpu_custom_call.1} parent=1 // pred_check
      _
    $region15: #{tpu_custom_call.1} parent=1 // pred_check_branch
      %1520 = sbr.rel (0) target = $region17
    $region16: #{tpu_custom_call.1} parent=1 // pred_region
      %s1522 = ssub.s32 256, 256
      %1523 = vsyncadd [#allocation3], %s1522
      %s1524 = sshll.u32 [#allocation2], 4
      %s1525 = int_to_ptr.vmem [resolvable:$true] %s1524
      %1530 = dma.vmem_to_hbm [thread:$0]  %s1525, 256, %s3, [#allocation3], 128, 128, 8
    $region17: #{tpu_custom_call.1} parent=1 // pred_fallthru
      _
    // Predicated region
    $region18: #{tpu_custom_call.1} parent=1 // pred_check
      _
    $region19: #{tpu_custom_call.1} parent=1 // pred_check_branch
      %1532 = sbr.rel (0) target = $region21
    $region20: #{tpu_custom_call.1} parent=1 // pred_region
      %1533 = dma.done [#allocation3], 256
    $region21: #{tpu_custom_call.1} parent=1 // pred_fallthru
      _
    %1534 = vsyncpa [#allocation3], 1

</llo_original>
